<compile_context>
chip_gen: v7x
topology: tpu7x:2x2x1
jax: 0.10.0
libtpu: 0.0.40
codegen_flags: <defaults>
</compile_context>

<pallas_src>
import jax
import jax.numpy as jnp
from jax.experimental import pallas as pl
from jax.experimental.pallas import tpu as pltpu

# (in_features, out_features) per layer, matching the nn.Sequential spec.
DIMS = ((8, 6), (6, 5), (5, 4), (4, 3), (3, 1))
LANES = 128
SUBLANES = 8
SUBBLOCK = LANES * SUBLANES        # 1024 elements = one full f32 (8,128) vreg


def mlp_kernel(p_ref, x_ref, o_ref):
    """Fused 5-layer MLP on one batch tile.

    p_ref: (P,) f32 in SMEM           — packed [W1,b1,...,W5,b5], W row-major (in,out).
    x_ref: (8, tb//128, 128) f32 VMEM — activations; (sub-block, lane) batch layout.
    o_ref: (tb//128, 128)    f32 VMEM — output; full (8,128) unmasked stores.
    """
    n_layers = len(DIMS)
    n_sub = x_ref.shape[1] // SUBLANES          # 1024-element sub-blocks per tile

    # Hoist all 132 weight/bias scalars out of the sub-block loop: scalar (sreg)
    # splats read from SMEM once per grid step.  Never pre-broadcast to vregs.
    off = 0
    weights, biases = [], []
    for din, dout in DIMS:
        weights.append([[p_ref[off + i * dout + o] for o in range(dout)]
                        for i in range(din)])
        biases.append([p_ref[off + din * dout + o] for o in range(dout)])
        off += din * dout + dout

    @pl.loop(0, n_sub)
    def _(s):
        base = pl.multiple_of(s * SUBLANES, SUBLANES)
        # Each per-feature activation row is a full (8,128) f32 vreg.
        rows = [x_ref[i, pl.ds(base, SUBLANES), :] for i in range(DIMS[0][0])]
        for li, (din, dout) in enumerate(DIMS):
            new_rows = []
            for o in range(dout):
                # out[o] = sum_i W[i,o] * h[i] + b[o]   (pure VPU work)
                acc = rows[0] * weights[li][0][o]
                for i in range(1, din):
                    acc = acc + rows[i] * weights[li][i][o]
                acc = acc + biases[li][o]
                if li < n_layers - 1:
                    acc = jnp.maximum(acc, 0.0)          # ReLU (skipped on last layer)
                new_rows.append(acc)
            rows = new_rows
        o_ref[pl.ds(base, SUBLANES), :] = rows[0].astype(o_ref.dtype)


def pack_params(params):
    """Flatten all (W, b) pairs into one f32 vector (W row-major (in, out))."""
    parts = []
    for w, b in params:
        parts.append(w.reshape(-1))
        parts.append(b.reshape(-1))
    return jnp.concatenate(parts).astype(jnp.float32)


def _pick_tile(batch, tb_max):
    """Tile size in elements: multiple of 1024, <= tb_max, and >= 2 tiles whenever
    the batch allows it (so v7x's two TensorCores both get work)."""
    n_sub = -(-batch // SUBBLOCK)                # ceil(batch / 1024)
    max_sub = max(1, tb_max // SUBBLOCK)
    if n_sub >= 2:
        sub_per_tile = min(max_sub, -(-n_sub // 2))
    else:
        sub_per_tile = 1
    return sub_per_tile * SUBBLOCK


def to_lane_layout(x, b_pad):
    """(B, 8) PyTorch layout -> (8, b_pad//128, 128) device layout.

    This is the only extra HBM copy; hoist it out of the hot path (or have the
    caller produce this layout directly) when the forward is called repeatedly.
    """
    B, fin = x.shape
    xt = jnp.pad(x.T, ((0, 0), (0, b_pad - B)))          # (8, b_pad)
    return xt.reshape(fin, b_pad // LANES, LANES)


def lua_forward_prelayout(xt, packed, batch, *, tb):
    """xt: (8, b_pad//128, 128) f32; packed: (132,) f32; returns (batch, 1) f32."""
    fin, nblk, lanes = xt.shape
    assert fin == DIMS[0][0] and lanes == LANES
    b_pad = nblk * lanes
    assert tb % SUBBLOCK == 0 and b_pad % tb == 0
    n_tiles = b_pad // tb

    out = pl.pallas_call(
        mlp_kernel,
        out_shape=jax.ShapeDtypeStruct((b_pad // LANES, LANES), jnp.float32),
        grid=(n_tiles,),
        in_specs=[
            # Packed weights/biases: whole tiny array resident in SMEM.
            pl.BlockSpec(memory_space=pltpu.MemorySpace.SMEM),
            # Input activations: one (8, tb//128, 128) tile per grid step,
            # auto double-buffered by the BlockSpec pipeline.
            pl.BlockSpec((fin, tb // LANES, LANES), lambda t: (0, t, 0)),
        ],
        out_specs=pl.BlockSpec((tb // LANES, LANES), lambda t: (t, 0)),
        compiler_params=pltpu.CompilerParams(
            dimension_semantics=("parallel",),            # megacore on v7x
            vmem_limit_bytes=max(16 << 20, int(1.5 * 72 * tb))),
        cost_estimate=pl.CostEstimate(flops=226 * b_pad,
                                      transcendentals=0,
                                      bytes_accessed=36 * b_pad),
    )(packed, xt)

    return out.reshape(-1)[:batch].reshape(batch, 1)


def lua_forward(x, params, *, tb_max=128 * 1024):
    """x: (B, 8) float32 (PyTorch layout); returns (B, 1) float32."""
    B, fin = x.shape
    assert fin == DIMS[0][0], (fin, DIMS[0][0])
    tb = _pick_tile(B, tb_max)
    n_tiles = -(-B // tb)
    b_pad = n_tiles * tb
    packed = pack_params(params)
    xt = to_lane_layout(x.astype(jnp.float32), b_pad)
    return lua_forward_prelayout(xt, packed, B, tb=tb)


def init_params(key):
    """Deterministic init matching PyTorch nn.Linear's U(-1/sqrt(fan_in), +...).

    Weights stored transposed as (in, out) so the math is x @ W + b
    (== x @ weight.T + bias in PyTorch convention).
    """
    params = []
    for fan_in, fan_out in DIMS:
        kw, kb, key = jax.random.split(key, 3)
        bound = 1.0 / (fan_in ** 0.5)
        w = jax.random.uniform(kw, (fan_in, fan_out), jnp.float32, -bound, bound)
        b = jax.random.uniform(kb, (fan_out,), jnp.float32, -bound, bound)
        params.append((w, b))
    return params


def reference_forward(x, params):
    h = x
    for i, (w, b) in enumerate(params):
        h = h @ w + b
        if i < len(params) - 1:
            h = jnp.maximum(h, 0.0)
    return h


if __name__ == "__main__":
    key = jax.random.PRNGKey(0)
    kx, kp = jax.random.split(key)

    # Small shapes; B is deliberately NOT a multiple of the tile so padding/slicing
    # is exercised, and tb_max=2048 gives 2 grid tiles x 2 in-kernel sub-blocks.
    B = 2500
    x = jax.random.normal(kx, (B, 8), jnp.float32)
    params = init_params(kp)

    out = lua_forward(x, params, tb_max=2048)
    jax.block_until_ready(out)

    ref = reference_forward(x, params)
    assert out.shape == (B, 1), out.shape
    assert jnp.allclose(out, ref, atol=1e-5, rtol=1e-5), (
        float(jnp.max(jnp.abs(out - ref))))

    print("KERNEL_OK")
</pallas_src>

<mosaic_0001>
module attributes {stable_mosaic.version = 11 : i64} {
  func.func @mlp_kernel(%arg0: i32, %arg1: memref<132xf32, #tpu.memory_space<smem>>, %arg2: memref<8x16x128xf32, #tpu.memory_space<vmem>>, %arg3: memref<16x128xf32, #tpu.memory_space<vmem>>) attributes {dimension_semantics = [#tpu.dimension_semantics<parallel>], iteration_bounds = array<i64: 2>, scalar_prefetch = 0 : i64, scratch_operands = 0 : i64, tpu.core_type = #tpu.core_type<tc>, window_params = [{transform_indices = @transform_0, window_bounds = array<i64: 132>}, {transform_indices = @transform_1, window_bounds = array<i64: 8, 16, 128>}, {transform_indices = @transform_2, window_bounds = array<i64: 16, 128>}]} {
    %c0 = arith.constant 0 : index
    %0 = memref.load %arg1[%c0] : memref<132xf32, #tpu.memory_space<smem>>
    %c1 = arith.constant 1 : index
    %1 = memref.load %arg1[%c1] : memref<132xf32, #tpu.memory_space<smem>>
    %c2 = arith.constant 2 : index
    %2 = memref.load %arg1[%c2] : memref<132xf32, #tpu.memory_space<smem>>
    %c3 = arith.constant 3 : index
    %3 = memref.load %arg1[%c3] : memref<132xf32, #tpu.memory_space<smem>>
    %c4 = arith.constant 4 : index
    %4 = memref.load %arg1[%c4] : memref<132xf32, #tpu.memory_space<smem>>
    %c5 = arith.constant 5 : index
    %5 = memref.load %arg1[%c5] : memref<132xf32, #tpu.memory_space<smem>>
    %c6 = arith.constant 6 : index
    %6 = memref.load %arg1[%c6] : memref<132xf32, #tpu.memory_space<smem>>
    %c7 = arith.constant 7 : index
    %7 = memref.load %arg1[%c7] : memref<132xf32, #tpu.memory_space<smem>>
    %c8 = arith.constant 8 : index
    %8 = memref.load %arg1[%c8] : memref<132xf32, #tpu.memory_space<smem>>
    %c9 = arith.constant 9 : index
    %9 = memref.load %arg1[%c9] : memref<132xf32, #tpu.memory_space<smem>>
    %c10 = arith.constant 10 : index
    %10 = memref.load %arg1[%c10] : memref<132xf32, #tpu.memory_space<smem>>
    %c11 = arith.constant 11 : index
    %11 = memref.load %arg1[%c11] : memref<132xf32, #tpu.memory_space<smem>>
    %c12 = arith.constant 12 : index
    %12 = memref.load %arg1[%c12] : memref<132xf32, #tpu.memory_space<smem>>
    %c13 = arith.constant 13 : index
    %13 = memref.load %arg1[%c13] : memref<132xf32, #tpu.memory_space<smem>>
    %c14 = arith.constant 14 : index
    %14 = memref.load %arg1[%c14] : memref<132xf32, #tpu.memory_space<smem>>
    %c15 = arith.constant 15 : index
    %15 = memref.load %arg1[%c15] : memref<132xf32, #tpu.memory_space<smem>>
    %c16 = arith.constant 16 : index
    %16 = memref.load %arg1[%c16] : memref<132xf32, #tpu.memory_space<smem>>
    %c17 = arith.constant 17 : index
    %17 = memref.load %arg1[%c17] : memref<132xf32, #tpu.memory_space<smem>>
    %c18 = arith.constant 18 : index
    %18 = memref.load %arg1[%c18] : memref<132xf32, #tpu.memory_space<smem>>
    %c19 = arith.constant 19 : index
    %19 = memref.load %arg1[%c19] : memref<132xf32, #tpu.memory_space<smem>>
    %c20 = arith.constant 20 : index
    %20 = memref.load %arg1[%c20] : memref<132xf32, #tpu.memory_space<smem>>
    %c21 = arith.constant 21 : index
    %21 = memref.load %arg1[%c21] : memref<132xf32, #tpu.memory_space<smem>>
    %c22 = arith.constant 22 : index
    %22 = memref.load %arg1[%c22] : memref<132xf32, #tpu.memory_space<smem>>
    %c23 = arith.constant 23 : index
    %23 = memref.load %arg1[%c23] : memref<132xf32, #tpu.memory_space<smem>>
    %c24 = arith.constant 24 : index
    %24 = memref.load %arg1[%c24] : memref<132xf32, #tpu.memory_space<smem>>
    %c25 = arith.constant 25 : index
    %25 = memref.load %arg1[%c25] : memref<132xf32, #tpu.memory_space<smem>>
    %c26 = arith.constant 26 : index
    %26 = memref.load %arg1[%c26] : memref<132xf32, #tpu.memory_space<smem>>
    %c27 = arith.constant 27 : index
    %27 = memref.load %arg1[%c27] : memref<132xf32, #tpu.memory_space<smem>>
    %c28 = arith.constant 28 : index
    %28 = memref.load %arg1[%c28] : memref<132xf32, #tpu.memory_space<smem>>
    %c29 = arith.constant 29 : index
    %29 = memref.load %arg1[%c29] : memref<132xf32, #tpu.memory_space<smem>>
    %c30 = arith.constant 30 : index
    %30 = memref.load %arg1[%c30] : memref<132xf32, #tpu.memory_space<smem>>
    %c31 = arith.constant 31 : index
    %31 = memref.load %arg1[%c31] : memref<132xf32, #tpu.memory_space<smem>>
    %c32 = arith.constant 32 : index
    %32 = memref.load %arg1[%c32] : memref<132xf32, #tpu.memory_space<smem>>
    %c33 = arith.constant 33 : index
    %33 = memref.load %arg1[%c33] : memref<132xf32, #tpu.memory_space<smem>>
    %c34 = arith.constant 34 : index
    %34 = memref.load %arg1[%c34] : memref<132xf32, #tpu.memory_space<smem>>
    %c35 = arith.constant 35 : index
    %35 = memref.load %arg1[%c35] : memref<132xf32, #tpu.memory_space<smem>>
    %c36 = arith.constant 36 : index
    %36 = memref.load %arg1[%c36] : memref<132xf32, #tpu.memory_space<smem>>
    %c37 = arith.constant 37 : index
    %37 = memref.load %arg1[%c37] : memref<132xf32, #tpu.memory_space<smem>>
    %c38 = arith.constant 38 : index
    %38 = memref.load %arg1[%c38] : memref<132xf32, #tpu.memory_space<smem>>
    %c39 = arith.constant 39 : index
    %39 = memref.load %arg1[%c39] : memref<132xf32, #tpu.memory_space<smem>>
    %c40 = arith.constant 40 : index
    %40 = memref.load %arg1[%c40] : memref<132xf32, #tpu.memory_space<smem>>
    %c41 = arith.constant 41 : index
    %41 = memref.load %arg1[%c41] : memref<132xf32, #tpu.memory_space<smem>>
    %c42 = arith.constant 42 : index
    %42 = memref.load %arg1[%c42] : memref<132xf32, #tpu.memory_space<smem>>
    %c43 = arith.constant 43 : index
    %43 = memref.load %arg1[%c43] : memref<132xf32, #tpu.memory_space<smem>>
    %c44 = arith.constant 44 : index
    %44 = memref.load %arg1[%c44] : memref<132xf32, #tpu.memory_space<smem>>
    %c45 = arith.constant 45 : index
    %45 = memref.load %arg1[%c45] : memref<132xf32, #tpu.memory_space<smem>>
    %c46 = arith.constant 46 : index
    %46 = memref.load %arg1[%c46] : memref<132xf32, #tpu.memory_space<smem>>
    %c47 = arith.constant 47 : index
    %47 = memref.load %arg1[%c47] : memref<132xf32, #tpu.memory_space<smem>>
    %c48 = arith.constant 48 : index
    %48 = memref.load %arg1[%c48] : memref<132xf32, #tpu.memory_space<smem>>
    %c49 = arith.constant 49 : index
    %49 = memref.load %arg1[%c49] : memref<132xf32, #tpu.memory_space<smem>>
    %c50 = arith.constant 50 : index
    %50 = memref.load %arg1[%c50] : memref<132xf32, #tpu.memory_space<smem>>
    %c51 = arith.constant 51 : index
    %51 = memref.load %arg1[%c51] : memref<132xf32, #tpu.memory_space<smem>>
    %c52 = arith.constant 52 : index
    %52 = memref.load %arg1[%c52] : memref<132xf32, #tpu.memory_space<smem>>
    %c53 = arith.constant 53 : index
    %53 = memref.load %arg1[%c53] : memref<132xf32, #tpu.memory_space<smem>>
    %c54 = arith.constant 54 : index
    %54 = memref.load %arg1[%c54] : memref<132xf32, #tpu.memory_space<smem>>
    %c55 = arith.constant 55 : index
    %55 = memref.load %arg1[%c55] : memref<132xf32, #tpu.memory_space<smem>>
    %c56 = arith.constant 56 : index
    %56 = memref.load %arg1[%c56] : memref<132xf32, #tpu.memory_space<smem>>
    %c57 = arith.constant 57 : index
    %57 = memref.load %arg1[%c57] : memref<132xf32, #tpu.memory_space<smem>>
    %c58 = arith.constant 58 : index
    %58 = memref.load %arg1[%c58] : memref<132xf32, #tpu.memory_space<smem>>
    %c59 = arith.constant 59 : index
    %59 = memref.load %arg1[%c59] : memref<132xf32, #tpu.memory_space<smem>>
    %c60 = arith.constant 60 : index
    %60 = memref.load %arg1[%c60] : memref<132xf32, #tpu.memory_space<smem>>
    %c61 = arith.constant 61 : index
    %61 = memref.load %arg1[%c61] : memref<132xf32, #tpu.memory_space<smem>>
    %c62 = arith.constant 62 : index
    %62 = memref.load %arg1[%c62] : memref<132xf32, #tpu.memory_space<smem>>
    %c63 = arith.constant 63 : index
    %63 = memref.load %arg1[%c63] : memref<132xf32, #tpu.memory_space<smem>>
    %c64 = arith.constant 64 : index
    %64 = memref.load %arg1[%c64] : memref<132xf32, #tpu.memory_space<smem>>
    %c65 = arith.constant 65 : index
    %65 = memref.load %arg1[%c65] : memref<132xf32, #tpu.memory_space<smem>>
    %c66 = arith.constant 66 : index
    %66 = memref.load %arg1[%c66] : memref<132xf32, #tpu.memory_space<smem>>
    %c67 = arith.constant 67 : index
    %67 = memref.load %arg1[%c67] : memref<132xf32, #tpu.memory_space<smem>>
    %c68 = arith.constant 68 : index
    %68 = memref.load %arg1[%c68] : memref<132xf32, #tpu.memory_space<smem>>
    %c69 = arith.constant 69 : index
    %69 = memref.load %arg1[%c69] : memref<132xf32, #tpu.memory_space<smem>>
    %c70 = arith.constant 70 : index
    %70 = memref.load %arg1[%c70] : memref<132xf32, #tpu.memory_space<smem>>
    %c71 = arith.constant 71 : index
    %71 = memref.load %arg1[%c71] : memref<132xf32, #tpu.memory_space<smem>>
    %c72 = arith.constant 72 : index
    %72 = memref.load %arg1[%c72] : memref<132xf32, #tpu.memory_space<smem>>
    %c73 = arith.constant 73 : index
    %73 = memref.load %arg1[%c73] : memref<132xf32, #tpu.memory_space<smem>>
    %c74 = arith.constant 74 : index
    %74 = memref.load %arg1[%c74] : memref<132xf32, #tpu.memory_space<smem>>
    %c75 = arith.constant 75 : index
    %75 = memref.load %arg1[%c75] : memref<132xf32, #tpu.memory_space<smem>>
    %c76 = arith.constant 76 : index
    %76 = memref.load %arg1[%c76] : memref<132xf32, #tpu.memory_space<smem>>
    %c77 = arith.constant 77 : index
    %77 = memref.load %arg1[%c77] : memref<132xf32, #tpu.memory_space<smem>>
    %c78 = arith.constant 78 : index
    %78 = memref.load %arg1[%c78] : memref<132xf32, #tpu.memory_space<smem>>
    %c79 = arith.constant 79 : index
    %79 = memref.load %arg1[%c79] : memref<132xf32, #tpu.memory_space<smem>>
    %c80 = arith.constant 80 : index
    %80 = memref.load %arg1[%c80] : memref<132xf32, #tpu.memory_space<smem>>
    %c81 = arith.constant 81 : index
    %81 = memref.load %arg1[%c81] : memref<132xf32, #tpu.memory_space<smem>>
    %c82 = arith.constant 82 : index
    %82 = memref.load %arg1[%c82] : memref<132xf32, #tpu.memory_space<smem>>
    %c83 = arith.constant 83 : index
    %83 = memref.load %arg1[%c83] : memref<132xf32, #tpu.memory_space<smem>>
    %c84 = arith.constant 84 : index
    %84 = memref.load %arg1[%c84] : memref<132xf32, #tpu.memory_space<smem>>
    %c85 = arith.constant 85 : index
    %85 = memref.load %arg1[%c85] : memref<132xf32, #tpu.memory_space<smem>>
    %c86 = arith.constant 86 : index
    %86 = memref.load %arg1[%c86] : memref<132xf32, #tpu.memory_space<smem>>
    %c87 = arith.constant 87 : index
    %87 = memref.load %arg1[%c87] : memref<132xf32, #tpu.memory_space<smem>>
    %c88 = arith.constant 88 : index
    %88 = memref.load %arg1[%c88] : memref<132xf32, #tpu.memory_space<smem>>
    %c89 = arith.constant 89 : index
    %89 = memref.load %arg1[%c89] : memref<132xf32, #tpu.memory_space<smem>>
    %c90 = arith.constant 90 : index
    %90 = memref.load %arg1[%c90] : memref<132xf32, #tpu.memory_space<smem>>
    %c91 = arith.constant 91 : index
    %91 = memref.load %arg1[%c91] : memref<132xf32, #tpu.memory_space<smem>>
    %c92 = arith.constant 92 : index
    %92 = memref.load %arg1[%c92] : memref<132xf32, #tpu.memory_space<smem>>
    %c93 = arith.constant 93 : index
    %93 = memref.load %arg1[%c93] : memref<132xf32, #tpu.memory_space<smem>>
    %c94 = arith.constant 94 : index
    %94 = memref.load %arg1[%c94] : memref<132xf32, #tpu.memory_space<smem>>
    %c95 = arith.constant 95 : index
    %95 = memref.load %arg1[%c95] : memref<132xf32, #tpu.memory_space<smem>>
    %c96 = arith.constant 96 : index
    %96 = memref.load %arg1[%c96] : memref<132xf32, #tpu.memory_space<smem>>
    %c97 = arith.constant 97 : index
    %97 = memref.load %arg1[%c97] : memref<132xf32, #tpu.memory_space<smem>>
    %c98 = arith.constant 98 : index
    %98 = memref.load %arg1[%c98] : memref<132xf32, #tpu.memory_space<smem>>
    %c99 = arith.constant 99 : index
    %99 = memref.load %arg1[%c99] : memref<132xf32, #tpu.memory_space<smem>>
    %c100 = arith.constant 100 : index
    %100 = memref.load %arg1[%c100] : memref<132xf32, #tpu.memory_space<smem>>
    %c101 = arith.constant 101 : index
    %101 = memref.load %arg1[%c101] : memref<132xf32, #tpu.memory_space<smem>>
    %c102 = arith.constant 102 : index
    %102 = memref.load %arg1[%c102] : memref<132xf32, #tpu.memory_space<smem>>
    %c103 = arith.constant 103 : index
    %103 = memref.load %arg1[%c103] : memref<132xf32, #tpu.memory_space<smem>>
    %c104 = arith.constant 104 : index
    %104 = memref.load %arg1[%c104] : memref<132xf32, #tpu.memory_space<smem>>
    %c105 = arith.constant 105 : index
    %105 = memref.load %arg1[%c105] : memref<132xf32, #tpu.memory_space<smem>>
    %c106 = arith.constant 106 : index
    %106 = memref.load %arg1[%c106] : memref<132xf32, #tpu.memory_space<smem>>
    %c107 = arith.constant 107 : index
    %107 = memref.load %arg1[%c107] : memref<132xf32, #tpu.memory_space<smem>>
    %c108 = arith.constant 108 : index
    %108 = memref.load %arg1[%c108] : memref<132xf32, #tpu.memory_space<smem>>
    %c109 = arith.constant 109 : index
    %109 = memref.load %arg1[%c109] : memref<132xf32, #tpu.memory_space<smem>>
    %c110 = arith.constant 110 : index
    %110 = memref.load %arg1[%c110] : memref<132xf32, #tpu.memory_space<smem>>
    %c111 = arith.constant 111 : index
    %111 = memref.load %arg1[%c111] : memref<132xf32, #tpu.memory_space<smem>>
    %c112 = arith.constant 112 : index
    %112 = memref.load %arg1[%c112] : memref<132xf32, #tpu.memory_space<smem>>
    %c113 = arith.constant 113 : index
    %113 = memref.load %arg1[%c113] : memref<132xf32, #tpu.memory_space<smem>>
    %c114 = arith.constant 114 : index
    %114 = memref.load %arg1[%c114] : memref<132xf32, #tpu.memory_space<smem>>
    %c115 = arith.constant 115 : index
    %115 = memref.load %arg1[%c115] : memref<132xf32, #tpu.memory_space<smem>>
    %c116 = arith.constant 116 : index
    %116 = memref.load %arg1[%c116] : memref<132xf32, #tpu.memory_space<smem>>
    %c117 = arith.constant 117 : index
    %117 = memref.load %arg1[%c117] : memref<132xf32, #tpu.memory_space<smem>>
    %c118 = arith.constant 118 : index
    %118 = memref.load %arg1[%c118] : memref<132xf32, #tpu.memory_space<smem>>
    %c119 = arith.constant 119 : index
    %119 = memref.load %arg1[%c119] : memref<132xf32, #tpu.memory_space<smem>>
    %c120 = arith.constant 120 : index
    %120 = memref.load %arg1[%c120] : memref<132xf32, #tpu.memory_space<smem>>
    %c121 = arith.constant 121 : index
    %121 = memref.load %arg1[%c121] : memref<132xf32, #tpu.memory_space<smem>>
    %c122 = arith.constant 122 : index
    %122 = memref.load %arg1[%c122] : memref<132xf32, #tpu.memory_space<smem>>
    %c123 = arith.constant 123 : index
    %123 = memref.load %arg1[%c123] : memref<132xf32, #tpu.memory_space<smem>>
    %c124 = arith.constant 124 : index
    %124 = memref.load %arg1[%c124] : memref<132xf32, #tpu.memory_space<smem>>
    %c125 = arith.constant 125 : index
    %125 = memref.load %arg1[%c125] : memref<132xf32, #tpu.memory_space<smem>>
    %c126 = arith.constant 126 : index
    %126 = memref.load %arg1[%c126] : memref<132xf32, #tpu.memory_space<smem>>
    %c127 = arith.constant 127 : index
    %127 = memref.load %arg1[%c127] : memref<132xf32, #tpu.memory_space<smem>>
    %c128 = arith.constant 128 : index
    %128 = memref.load %arg1[%c128] : memref<132xf32, #tpu.memory_space<smem>>
    %c129 = arith.constant 129 : index
    %129 = memref.load %arg1[%c129] : memref<132xf32, #tpu.memory_space<smem>>
    %c130 = arith.constant 130 : index
    %130 = memref.load %arg1[%c130] : memref<132xf32, #tpu.memory_space<smem>>
    %c131 = arith.constant 131 : index
    %131 = memref.load %arg1[%c131] : memref<132xf32, #tpu.memory_space<smem>>
    %c0_i32 = arith.constant 0 : i32
    %c2_i32 = arith.constant 2 : i32
    %132 = arith.addi %c0_i32, %c2_i32 : i32
    %c1_i32 = arith.constant 1 : i32
    scf.for %arg4 = %c0_i32 to %132 step %c1_i32  : i32 {
      %c1_i32_1 = arith.constant 1 : i32
      %133 = arith.muli %arg4, %c1_i32_1 : i32
      %c0_i32_2 = arith.constant 0 : i32
      %134 = arith.addi %c0_i32_2, %133 : i32
      %c8_i32 = arith.constant 8 : i32
      %135 = arith.muli %134, %c8_i32 : i32
      %136 = tpu.assume_multiple %135, 8 : i32
      %c0_3 = arith.constant 0 : index
      %137 = arith.index_cast %136 : i32 to index
      %c0_4 = arith.constant 0 : index
      %138 = vector.load %arg2[%c0_3, %137, %c0_4] : memref<8x16x128xf32, #tpu.memory_space<vmem>>, vector<1x8x128xf32>
      %139 = vector.shape_cast %138 : vector<1x8x128xf32> to vector<8x128xf32>
      %c1_5 = arith.constant 1 : index
      %140 = arith.index_cast %136 : i32 to index
      %c0_6 = arith.constant 0 : index
      %141 = vector.load %arg2[%c1_5, %140, %c0_6] : memref<8x16x128xf32, #tpu.memory_space<vmem>>, vector<1x8x128xf32>
      %142 = vector.shape_cast %141 : vector<1x8x128xf32> to vector<8x128xf32>
      %c2_7 = arith.constant 2 : index
      %143 = arith.index_cast %136 : i32 to index
      %c0_8 = arith.constant 0 : index
      %144 = vector.load %arg2[%c2_7, %143, %c0_8] : memref<8x16x128xf32, #tpu.memory_space<vmem>>, vector<1x8x128xf32>
      %145 = vector.shape_cast %144 : vector<1x8x128xf32> to vector<8x128xf32>
      %c3_9 = arith.constant 3 : index
      %146 = arith.index_cast %136 : i32 to index
      %c0_10 = arith.constant 0 : index
      %147 = vector.load %arg2[%c3_9, %146, %c0_10] : memref<8x16x128xf32, #tpu.memory_space<vmem>>, vector<1x8x128xf32>
      %148 = vector.shape_cast %147 : vector<1x8x128xf32> to vector<8x128xf32>
      %c4_11 = arith.constant 4 : index
      %149 = arith.index_cast %136 : i32 to index
      %c0_12 = arith.constant 0 : index
      %150 = vector.load %arg2[%c4_11, %149, %c0_12] : memref<8x16x128xf32, #tpu.memory_space<vmem>>, vector<1x8x128xf32>
      %151 = vector.shape_cast %150 : vector<1x8x128xf32> to vector<8x128xf32>
      %c5_13 = arith.constant 5 : index
      %152 = arith.index_cast %136 : i32 to index
      %c0_14 = arith.constant 0 : index
      %153 = vector.load %arg2[%c5_13, %152, %c0_14] : memref<8x16x128xf32, #tpu.memory_space<vmem>>, vector<1x8x128xf32>
      %154 = vector.shape_cast %153 : vector<1x8x128xf32> to vector<8x128xf32>
      %c6_15 = arith.constant 6 : index
      %155 = arith.index_cast %136 : i32 to index
      %c0_16 = arith.constant 0 : index
      %156 = vector.load %arg2[%c6_15, %155, %c0_16] : memref<8x16x128xf32, #tpu.memory_space<vmem>>, vector<1x8x128xf32>
      %157 = vector.shape_cast %156 : vector<1x8x128xf32> to vector<8x128xf32>
      %c7_17 = arith.constant 7 : index
      %158 = arith.index_cast %136 : i32 to index
      %c0_18 = arith.constant 0 : index
      %159 = vector.load %arg2[%c7_17, %158, %c0_18] : memref<8x16x128xf32, #tpu.memory_space<vmem>>, vector<1x8x128xf32>
      %160 = vector.shape_cast %159 : vector<1x8x128xf32> to vector<8x128xf32>
      %161 = vector.broadcast %0 : f32 to vector<8x128xf32>
      %162 = arith.mulf %139, %161 : vector<8x128xf32>
      %163 = vector.broadcast %6 : f32 to vector<8x128xf32>
      %164 = arith.mulf %142, %163 : vector<8x128xf32>
      %165 = arith.addf %162, %164 : vector<8x128xf32>
      %166 = vector.broadcast %12 : f32 to vector<8x128xf32>
      %167 = arith.mulf %145, %166 : vector<8x128xf32>
      %168 = arith.addf %165, %167 : vector<8x128xf32>
      %169 = vector.broadcast %18 : f32 to vector<8x128xf32>
      %170 = arith.mulf %148, %169 : vector<8x128xf32>
      %171 = arith.addf %168, %170 : vector<8x128xf32>
      %172 = vector.broadcast %24 : f32 to vector<8x128xf32>
      %173 = arith.mulf %151, %172 : vector<8x128xf32>
      %174 = arith.addf %171, %173 : vector<8x128xf32>
      %175 = vector.broadcast %30 : f32 to vector<8x128xf32>
      %176 = arith.mulf %154, %175 : vector<8x128xf32>
      %177 = arith.addf %174, %176 : vector<8x128xf32>
      %178 = vector.broadcast %36 : f32 to vector<8x128xf32>
      %179 = arith.mulf %157, %178 : vector<8x128xf32>
      %180 = arith.addf %177, %179 : vector<8x128xf32>
      %181 = vector.broadcast %42 : f32 to vector<8x128xf32>
      %182 = arith.mulf %160, %181 : vector<8x128xf32>
      %183 = arith.addf %180, %182 : vector<8x128xf32>
      %184 = vector.broadcast %48 : f32 to vector<8x128xf32>
      %185 = arith.addf %183, %184 : vector<8x128xf32>
      %cst = arith.constant 0.000000e+00 : f32
      %186 = vector.broadcast %cst : f32 to vector<8x128xf32>
      %187 = arith.maximumf %185, %186 : vector<8x128xf32>
      %188 = vector.broadcast %1 : f32 to vector<8x128xf32>
      %189 = arith.mulf %139, %188 : vector<8x128xf32>
      %190 = vector.broadcast %7 : f32 to vector<8x128xf32>
      %191 = arith.mulf %142, %190 : vector<8x128xf32>
      %192 = arith.addf %189, %191 : vector<8x128xf32>
      %193 = vector.broadcast %13 : f32 to vector<8x128xf32>
      %194 = arith.mulf %145, %193 : vector<8x128xf32>
      %195 = arith.addf %192, %194 : vector<8x128xf32>
      %196 = vector.broadcast %19 : f32 to vector<8x128xf32>
      %197 = arith.mulf %148, %196 : vector<8x128xf32>
      %198 = arith.addf %195, %197 : vector<8x128xf32>
      %199 = vector.broadcast %25 : f32 to vector<8x128xf32>
      %200 = arith.mulf %151, %199 : vector<8x128xf32>
      %201 = arith.addf %198, %200 : vector<8x128xf32>
      %202 = vector.broadcast %31 : f32 to vector<8x128xf32>
      %203 = arith.mulf %154, %202 : vector<8x128xf32>
      %204 = arith.addf %201, %203 : vector<8x128xf32>
      %205 = vector.broadcast %37 : f32 to vector<8x128xf32>
      %206 = arith.mulf %157, %205 : vector<8x128xf32>
      %207 = arith.addf %204, %206 : vector<8x128xf32>
      %208 = vector.broadcast %43 : f32 to vector<8x128xf32>
      %209 = arith.mulf %160, %208 : vector<8x128xf32>
      %210 = arith.addf %207, %209 : vector<8x128xf32>
      %211 = vector.broadcast %49 : f32 to vector<8x128xf32>
      %212 = arith.addf %210, %211 : vector<8x128xf32>
      %cst_19 = arith.constant 0.000000e+00 : f32
      %213 = vector.broadcast %cst_19 : f32 to vector<8x128xf32>
      %214 = arith.maximumf %212, %213 : vector<8x128xf32>
      %215 = vector.broadcast %2 : f32 to vector<8x128xf32>
      %216 = arith.mulf %139, %215 : vector<8x128xf32>
      %217 = vector.broadcast %8 : f32 to vector<8x128xf32>
      %218 = arith.mulf %142, %217 : vector<8x128xf32>
      %219 = arith.addf %216, %218 : vector<8x128xf32>
      %220 = vector.broadcast %14 : f32 to vector<8x128xf32>
      %221 = arith.mulf %145, %220 : vector<8x128xf32>
      %222 = arith.addf %219, %221 : vector<8x128xf32>
      %223 = vector.broadcast %20 : f32 to vector<8x128xf32>
      %224 = arith.mulf %148, %223 : vector<8x128xf32>
      %225 = arith.addf %222, %224 : vector<8x128xf32>
      %226 = vector.broadcast %26 : f32 to vector<8x128xf32>
      %227 = arith.mulf %151, %226 : vector<8x128xf32>
      %228 = arith.addf %225, %227 : vector<8x128xf32>
      %229 = vector.broadcast %32 : f32 to vector<8x128xf32>
      %230 = arith.mulf %154, %229 : vector<8x128xf32>
      %231 = arith.addf %228, %230 : vector<8x128xf32>
      %232 = vector.broadcast %38 : f32 to vector<8x128xf32>
      %233 = arith.mulf %157, %232 : vector<8x128xf32>
      %234 = arith.addf %231, %233 : vector<8x128xf32>
      %235 = vector.broadcast %44 : f32 to vector<8x128xf32>
      %236 = arith.mulf %160, %235 : vector<8x128xf32>
      %237 = arith.addf %234, %236 : vector<8x128xf32>
      %238 = vector.broadcast %50 : f32 to vector<8x128xf32>
      %239 = arith.addf %237, %238 : vector<8x128xf32>
      %cst_20 = arith.constant 0.000000e+00 : f32
      %240 = vector.broadcast %cst_20 : f32 to vector<8x128xf32>
      %241 = arith.maximumf %239, %240 : vector<8x128xf32>
      %242 = vector.broadcast %3 : f32 to vector<8x128xf32>
      %243 = arith.mulf %139, %242 : vector<8x128xf32>
      %244 = vector.broadcast %9 : f32 to vector<8x128xf32>
      %245 = arith.mulf %142, %244 : vector<8x128xf32>
      %246 = arith.addf %243, %245 : vector<8x128xf32>
      %247 = vector.broadcast %15 : f32 to vector<8x128xf32>
      %248 = arith.mulf %145, %247 : vector<8x128xf32>
      %249 = arith.addf %246, %248 : vector<8x128xf32>
      %250 = vector.broadcast %21 : f32 to vector<8x128xf32>
      %251 = arith.mulf %148, %250 : vector<8x128xf32>
      %252 = arith.addf %249, %251 : vector<8x128xf32>
      %253 = vector.broadcast %27 : f32 to vector<8x128xf32>
      %254 = arith.mulf %151, %253 : vector<8x128xf32>
      %255 = arith.addf %252, %254 : vector<8x128xf32>
      %256 = vector.broadcast %33 : f32 to vector<8x128xf32>
      %257 = arith.mulf %154, %256 : vector<8x128xf32>
      %258 = arith.addf %255, %257 : vector<8x128xf32>
      %259 = vector.broadcast %39 : f32 to vector<8x128xf32>
      %260 = arith.mulf %157, %259 : vector<8x128xf32>
      %261 = arith.addf %258, %260 : vector<8x128xf32>
      %262 = vector.broadcast %45 : f32 to vector<8x128xf32>
      %263 = arith.mulf %160, %262 : vector<8x128xf32>
      %264 = arith.addf %261, %263 : vector<8x128xf32>
      %265 = vector.broadcast %51 : f32 to vector<8x128xf32>
      %266 = arith.addf %264, %265 : vector<8x128xf32>
      %cst_21 = arith.constant 0.000000e+00 : f32
      %267 = vector.broadcast %cst_21 : f32 to vector<8x128xf32>
      %268 = arith.maximumf %266, %267 : vector<8x128xf32>
      %269 = vector.broadcast %4 : f32 to vector<8x128xf32>
      %270 = arith.mulf %139, %269 : vector<8x128xf32>
      %271 = vector.broadcast %10 : f32 to vector<8x128xf32>
      %272 = arith.mulf %142, %271 : vector<8x128xf32>
      %273 = arith.addf %270, %272 : vector<8x128xf32>
      %274 = vector.broadcast %16 : f32 to vector<8x128xf32>
      %275 = arith.mulf %145, %274 : vector<8x128xf32>
      %276 = arith.addf %273, %275 : vector<8x128xf32>
      %277 = vector.broadcast %22 : f32 to vector<8x128xf32>
      %278 = arith.mulf %148, %277 : vector<8x128xf32>
      %279 = arith.addf %276, %278 : vector<8x128xf32>
      %280 = vector.broadcast %28 : f32 to vector<8x128xf32>
      %281 = arith.mulf %151, %280 : vector<8x128xf32>
      %282 = arith.addf %279, %281 : vector<8x128xf32>
      %283 = vector.broadcast %34 : f32 to vector<8x128xf32>
      %284 = arith.mulf %154, %283 : vector<8x128xf32>
      %285 = arith.addf %282, %284 : vector<8x128xf32>
      %286 = vector.broadcast %40 : f32 to vector<8x128xf32>
      %287 = arith.mulf %157, %286 : vector<8x128xf32>
      %288 = arith.addf %285, %287 : vector<8x128xf32>
      %289 = vector.broadcast %46 : f32 to vector<8x128xf32>
      %290 = arith.mulf %160, %289 : vector<8x128xf32>
      %291 = arith.addf %288, %290 : vector<8x128xf32>
      %292 = vector.broadcast %52 : f32 to vector<8x128xf32>
      %293 = arith.addf %291, %292 : vector<8x128xf32>
      %cst_22 = arith.constant 0.000000e+00 : f32
      %294 = vector.broadcast %cst_22 : f32 to vector<8x128xf32>
      %295 = arith.maximumf %293, %294 : vector<8x128xf32>
      %296 = vector.broadcast %5 : f32 to vector<8x128xf32>
      %297 = arith.mulf %139, %296 : vector<8x128xf32>
      %298 = vector.broadcast %11 : f32 to vector<8x128xf32>
      %299 = arith.mulf %142, %298 : vector<8x128xf32>
      %300 = arith.addf %297, %299 : vector<8x128xf32>
      %301 = vector.broadcast %17 : f32 to vector<8x128xf32>
      %302 = arith.mulf %145, %301 : vector<8x128xf32>
      %303 = arith.addf %300, %302 : vector<8x128xf32>
      %304 = vector.broadcast %23 : f32 to vector<8x128xf32>
      %305 = arith.mulf %148, %304 : vector<8x128xf32>
      %306 = arith.addf %303, %305 : vector<8x128xf32>
      %307 = vector.broadcast %29 : f32 to vector<8x128xf32>
      %308 = arith.mulf %151, %307 : vector<8x128xf32>
      %309 = arith.addf %306, %308 : vector<8x128xf32>
      %310 = vector.broadcast %35 : f32 to vector<8x128xf32>
      %311 = arith.mulf %154, %310 : vector<8x128xf32>
      %312 = arith.addf %309, %311 : vector<8x128xf32>
      %313 = vector.broadcast %41 : f32 to vector<8x128xf32>
      %314 = arith.mulf %157, %313 : vector<8x128xf32>
      %315 = arith.addf %312, %314 : vector<8x128xf32>
      %316 = vector.broadcast %47 : f32 to vector<8x128xf32>
      %317 = arith.mulf %160, %316 : vector<8x128xf32>
      %318 = arith.addf %315, %317 : vector<8x128xf32>
      %319 = vector.broadcast %53 : f32 to vector<8x128xf32>
      %320 = arith.addf %318, %319 : vector<8x128xf32>
      %cst_23 = arith.constant 0.000000e+00 : f32
      %321 = vector.broadcast %cst_23 : f32 to vector<8x128xf32>
      %322 = arith.maximumf %320, %321 : vector<8x128xf32>
      %323 = vector.broadcast %54 : f32 to vector<8x128xf32>
      %324 = arith.mulf %187, %323 : vector<8x128xf32>
      %325 = vector.broadcast %59 : f32 to vector<8x128xf32>
      %326 = arith.mulf %214, %325 : vector<8x128xf32>
      %327 = arith.addf %324, %326 : vector<8x128xf32>
      %328 = vector.broadcast %64 : f32 to vector<8x128xf32>
      %329 = arith.mulf %241, %328 : vector<8x128xf32>
      %330 = arith.addf %327, %329 : vector<8x128xf32>
      %331 = vector.broadcast %69 : f32 to vector<8x128xf32>
      %332 = arith.mulf %268, %331 : vector<8x128xf32>
      %333 = arith.addf %330, %332 : vector<8x128xf32>
      %334 = vector.broadcast %74 : f32 to vector<8x128xf32>
      %335 = arith.mulf %295, %334 : vector<8x128xf32>
      %336 = arith.addf %333, %335 : vector<8x128xf32>
      %337 = vector.broadcast %79 : f32 to vector<8x128xf32>
      %338 = arith.mulf %322, %337 : vector<8x128xf32>
      %339 = arith.addf %336, %338 : vector<8x128xf32>
      %340 = vector.broadcast %84 : f32 to vector<8x128xf32>
      %341 = arith.addf %339, %340 : vector<8x128xf32>
      %cst_24 = arith.constant 0.000000e+00 : f32
      %342 = vector.broadcast %cst_24 : f32 to vector<8x128xf32>
      %343 = arith.maximumf %341, %342 : vector<8x128xf32>
      %344 = vector.broadcast %55 : f32 to vector<8x128xf32>
      %345 = arith.mulf %187, %344 : vector<8x128xf32>
      %346 = vector.broadcast %60 : f32 to vector<8x128xf32>
      %347 = arith.mulf %214, %346 : vector<8x128xf32>
      %348 = arith.addf %345, %347 : vector<8x128xf32>
      %349 = vector.broadcast %65 : f32 to vector<8x128xf32>
      %350 = arith.mulf %241, %349 : vector<8x128xf32>
      %351 = arith.addf %348, %350 : vector<8x128xf32>
      %352 = vector.broadcast %70 : f32 to vector<8x128xf32>
      %353 = arith.mulf %268, %352 : vector<8x128xf32>
      %354 = arith.addf %351, %353 : vector<8x128xf32>
      %355 = vector.broadcast %75 : f32 to vector<8x128xf32>
      %356 = arith.mulf %295, %355 : vector<8x128xf32>
      %357 = arith.addf %354, %356 : vector<8x128xf32>
      %358 = vector.broadcast %80 : f32 to vector<8x128xf32>
      %359 = arith.mulf %322, %358 : vector<8x128xf32>
      %360 = arith.addf %357, %359 : vector<8x128xf32>
      %361 = vector.broadcast %85 : f32 to vector<8x128xf32>
      %362 = arith.addf %360, %361 : vector<8x128xf32>
      %cst_25 = arith.constant 0.000000e+00 : f32
      %363 = vector.broadcast %cst_25 : f32 to vector<8x128xf32>
      %364 = arith.maximumf %362, %363 : vector<8x128xf32>
      %365 = vector.broadcast %56 : f32 to vector<8x128xf32>
      %366 = arith.mulf %187, %365 : vector<8x128xf32>
      %367 = vector.broadcast %61 : f32 to vector<8x128xf32>
      %368 = arith.mulf %214, %367 : vector<8x128xf32>
      %369 = arith.addf %366, %368 : vector<8x128xf32>
      %370 = vector.broadcast %66 : f32 to vector<8x128xf32>
      %371 = arith.mulf %241, %370 : vector<8x128xf32>
      %372 = arith.addf %369, %371 : vector<8x128xf32>
      %373 = vector.broadcast %71 : f32 to vector<8x128xf32>
      %374 = arith.mulf %268, %373 : vector<8x128xf32>
      %375 = arith.addf %372, %374 : vector<8x128xf32>
      %376 = vector.broadcast %76 : f32 to vector<8x128xf32>
      %377 = arith.mulf %295, %376 : vector<8x128xf32>
      %378 = arith.addf %375, %377 : vector<8x128xf32>
      %379 = vector.broadcast %81 : f32 to vector<8x128xf32>
      %380 = arith.mulf %322, %379 : vector<8x128xf32>
      %381 = arith.addf %378, %380 : vector<8x128xf32>
      %382 = vector.broadcast %86 : f32 to vector<8x128xf32>
      %383 = arith.addf %381, %382 : vector<8x128xf32>
      %cst_26 = arith.constant 0.000000e+00 : f32
      %384 = vector.broadcast %cst_26 : f32 to vector<8x128xf32>
      %385 = arith.maximumf %383, %384 : vector<8x128xf32>
      %386 = vector.broadcast %57 : f32 to vector<8x128xf32>
      %387 = arith.mulf %187, %386 : vector<8x128xf32>
      %388 = vector.broadcast %62 : f32 to vector<8x128xf32>
      %389 = arith.mulf %214, %388 : vector<8x128xf32>
      %390 = arith.addf %387, %389 : vector<8x128xf32>
      %391 = vector.broadcast %67 : f32 to vector<8x128xf32>
      %392 = arith.mulf %241, %391 : vector<8x128xf32>
      %393 = arith.addf %390, %392 : vector<8x128xf32>
      %394 = vector.broadcast %72 : f32 to vector<8x128xf32>
      %395 = arith.mulf %268, %394 : vector<8x128xf32>
      %396 = arith.addf %393, %395 : vector<8x128xf32>
      %397 = vector.broadcast %77 : f32 to vector<8x128xf32>
      %398 = arith.mulf %295, %397 : vector<8x128xf32>
      %399 = arith.addf %396, %398 : vector<8x128xf32>
      %400 = vector.broadcast %82 : f32 to vector<8x128xf32>
      %401 = arith.mulf %322, %400 : vector<8x128xf32>
      %402 = arith.addf %399, %401 : vector<8x128xf32>
      %403 = vector.broadcast %87 : f32 to vector<8x128xf32>
      %404 = arith.addf %402, %403 : vector<8x128xf32>
      %cst_27 = arith.constant 0.000000e+00 : f32
      %405 = vector.broadcast %cst_27 : f32 to vector<8x128xf32>
      %406 = arith.maximumf %404, %405 : vector<8x128xf32>
      %407 = vector.broadcast %58 : f32 to vector<8x128xf32>
      %408 = arith.mulf %187, %407 : vector<8x128xf32>
      %409 = vector.broadcast %63 : f32 to vector<8x128xf32>
      %410 = arith.mulf %214, %409 : vector<8x128xf32>
      %411 = arith.addf %408, %410 : vector<8x128xf32>
      %412 = vector.broadcast %68 : f32 to vector<8x128xf32>
      %413 = arith.mulf %241, %412 : vector<8x128xf32>
      %414 = arith.addf %411, %413 : vector<8x128xf32>
      %415 = vector.broadcast %73 : f32 to vector<8x128xf32>
      %416 = arith.mulf %268, %415 : vector<8x128xf32>
      %417 = arith.addf %414, %416 : vector<8x128xf32>
      %418 = vector.broadcast %78 : f32 to vector<8x128xf32>
      %419 = arith.mulf %295, %418 : vector<8x128xf32>
      %420 = arith.addf %417, %419 : vector<8x128xf32>
      %421 = vector.broadcast %83 : f32 to vector<8x128xf32>
      %422 = arith.mulf %322, %421 : vector<8x128xf32>
      %423 = arith.addf %420, %422 : vector<8x128xf32>
      %424 = vector.broadcast %88 : f32 to vector<8x128xf32>
      %425 = arith.addf %423, %424 : vector<8x128xf32>
      %cst_28 = arith.constant 0.000000e+00 : f32
      %426 = vector.broadcast %cst_28 : f32 to vector<8x128xf32>
      %427 = arith.maximumf %425, %426 : vector<8x128xf32>
      %428 = vector.broadcast %89 : f32 to vector<8x128xf32>
      %429 = arith.mulf %343, %428 : vector<8x128xf32>
      %430 = vector.broadcast %93 : f32 to vector<8x128xf32>
      %431 = arith.mulf %364, %430 : vector<8x128xf32>
      %432 = arith.addf %429, %431 : vector<8x128xf32>
      %433 = vector.broadcast %97 : f32 to vector<8x128xf32>
      %434 = arith.mulf %385, %433 : vector<8x128xf32>
      %435 = arith.addf %432, %434 : vector<8x128xf32>
      %436 = vector.broadcast %101 : f32 to vector<8x128xf32>
      %437 = arith.mulf %406, %436 : vector<8x128xf32>
      %438 = arith.addf %435, %437 : vector<8x128xf32>
      %439 = vector.broadcast %105 : f32 to vector<8x128xf32>
      %440 = arith.mulf %427, %439 : vector<8x128xf32>
      %441 = arith.addf %438, %440 : vector<8x128xf32>
      %442 = vector.broadcast %109 : f32 to vector<8x128xf32>
      %443 = arith.addf %441, %442 : vector<8x128xf32>
      %cst_29 = arith.constant 0.000000e+00 : f32
      %444 = vector.broadcast %cst_29 : f32 to vector<8x128xf32>
      %445 = arith.maximumf %443, %444 : vector<8x128xf32>
      %446 = vector.broadcast %90 : f32 to vector<8x128xf32>
      %447 = arith.mulf %343, %446 : vector<8x128xf32>
      %448 = vector.broadcast %94 : f32 to vector<8x128xf32>
      %449 = arith.mulf %364, %448 : vector<8x128xf32>
      %450 = arith.addf %447, %449 : vector<8x128xf32>
      %451 = vector.broadcast %98 : f32 to vector<8x128xf32>
      %452 = arith.mulf %385, %451 : vector<8x128xf32>
      %453 = arith.addf %450, %452 : vector<8x128xf32>
      %454 = vector.broadcast %102 : f32 to vector<8x128xf32>
      %455 = arith.mulf %406, %454 : vector<8x128xf32>
      %456 = arith.addf %453, %455 : vector<8x128xf32>
      %457 = vector.broadcast %106 : f32 to vector<8x128xf32>
      %458 = arith.mulf %427, %457 : vector<8x128xf32>
      %459 = arith.addf %456, %458 : vector<8x128xf32>
      %460 = vector.broadcast %110 : f32 to vector<8x128xf32>
      %461 = arith.addf %459, %460 : vector<8x128xf32>
      %cst_30 = arith.constant 0.000000e+00 : f32
      %462 = vector.broadcast %cst_30 : f32 to vector<8x128xf32>
      %463 = arith.maximumf %461, %462 : vector<8x128xf32>
      %464 = vector.broadcast %91 : f32 to vector<8x128xf32>
      %465 = arith.mulf %343, %464 : vector<8x128xf32>
      %466 = vector.broadcast %95 : f32 to vector<8x128xf32>
      %467 = arith.mulf %364, %466 : vector<8x128xf32>
      %468 = arith.addf %465, %467 : vector<8x128xf32>
      %469 = vector.broadcast %99 : f32 to vector<8x128xf32>
      %470 = arith.mulf %385, %469 : vector<8x128xf32>
      %471 = arith.addf %468, %470 : vector<8x128xf32>
      %472 = vector.broadcast %103 : f32 to vector<8x128xf32>
      %473 = arith.mulf %406, %472 : vector<8x128xf32>
      %474 = arith.addf %471, %473 : vector<8x128xf32>
      %475 = vector.broadcast %107 : f32 to vector<8x128xf32>
      %476 = arith.mulf %427, %475 : vector<8x128xf32>
      %477 = arith.addf %474, %476 : vector<8x128xf32>
      %478 = vector.broadcast %111 : f32 to vector<8x128xf32>
      %479 = arith.addf %477, %478 : vector<8x128xf32>
      %cst_31 = arith.constant 0.000000e+00 : f32
      %480 = vector.broadcast %cst_31 : f32 to vector<8x128xf32>
      %481 = arith.maximumf %479, %480 : vector<8x128xf32>
      %482 = vector.broadcast %92 : f32 to vector<8x128xf32>
      %483 = arith.mulf %343, %482 : vector<8x128xf32>
      %484 = vector.broadcast %96 : f32 to vector<8x128xf32>
      %485 = arith.mulf %364, %484 : vector<8x128xf32>
      %486 = arith.addf %483, %485 : vector<8x128xf32>
      %487 = vector.broadcast %100 : f32 to vector<8x128xf32>
      %488 = arith.mulf %385, %487 : vector<8x128xf32>
      %489 = arith.addf %486, %488 : vector<8x128xf32>
      %490 = vector.broadcast %104 : f32 to vector<8x128xf32>
      %491 = arith.mulf %406, %490 : vector<8x128xf32>
      %492 = arith.addf %489, %491 : vector<8x128xf32>
      %493 = vector.broadcast %108 : f32 to vector<8x128xf32>
      %494 = arith.mulf %427, %493 : vector<8x128xf32>
      %495 = arith.addf %492, %494 : vector<8x128xf32>
      %496 = vector.broadcast %112 : f32 to vector<8x128xf32>
      %497 = arith.addf %495, %496 : vector<8x128xf32>
      %cst_32 = arith.constant 0.000000e+00 : f32
      %498 = vector.broadcast %cst_32 : f32 to vector<8x128xf32>
      %499 = arith.maximumf %497, %498 : vector<8x128xf32>
      %500 = vector.broadcast %113 : f32 to vector<8x128xf32>
      %501 = arith.mulf %445, %500 : vector<8x128xf32>
      %502 = vector.broadcast %116 : f32 to vector<8x128xf32>
      %503 = arith.mulf %463, %502 : vector<8x128xf32>
      %504 = arith.addf %501, %503 : vector<8x128xf32>
      %505 = vector.broadcast %119 : f32 to vector<8x128xf32>
      %506 = arith.mulf %481, %505 : vector<8x128xf32>
      %507 = arith.addf %504, %506 : vector<8x128xf32>
      %508 = vector.broadcast %122 : f32 to vector<8x128xf32>
      %509 = arith.mulf %499, %508 : vector<8x128xf32>
      %510 = arith.addf %507, %509 : vector<8x128xf32>
      %511 = vector.broadcast %125 : f32 to vector<8x128xf32>
      %512 = arith.addf %510, %511 : vector<8x128xf32>
      %cst_33 = arith.constant 0.000000e+00 : f32
      %513 = vector.broadcast %cst_33 : f32 to vector<8x128xf32>
      %514 = arith.maximumf %512, %513 : vector<8x128xf32>
      %515 = vector.broadcast %114 : f32 to vector<8x128xf32>
      %516 = arith.mulf %445, %515 : vector<8x128xf32>
      %517 = vector.broadcast %117 : f32 to vector<8x128xf32>
      %518 = arith.mulf %463, %517 : vector<8x128xf32>
      %519 = arith.addf %516, %518 : vector<8x128xf32>
      %520 = vector.broadcast %120 : f32 to vector<8x128xf32>
      %521 = arith.mulf %481, %520 : vector<8x128xf32>
      %522 = arith.addf %519, %521 : vector<8x128xf32>
      %523 = vector.broadcast %123 : f32 to vector<8x128xf32>
      %524 = arith.mulf %499, %523 : vector<8x128xf32>
      %525 = arith.addf %522, %524 : vector<8x128xf32>
      %526 = vector.broadcast %126 : f32 to vector<8x128xf32>
      %527 = arith.addf %525, %526 : vector<8x128xf32>
      %cst_34 = arith.constant 0.000000e+00 : f32
      %528 = vector.broadcast %cst_34 : f32 to vector<8x128xf32>
      %529 = arith.maximumf %527, %528 : vector<8x128xf32>
      %530 = vector.broadcast %115 : f32 to vector<8x128xf32>
      %531 = arith.mulf %445, %530 : vector<8x128xf32>
      %532 = vector.broadcast %118 : f32 to vector<8x128xf32>
      %533 = arith.mulf %463, %532 : vector<8x128xf32>
      %534 = arith.addf %531, %533 : vector<8x128xf32>
      %535 = vector.broadcast %121 : f32 to vector<8x128xf32>
      %536 = arith.mulf %481, %535 : vector<8x128xf32>
      %537 = arith.addf %534, %536 : vector<8x128xf32>
      %538 = vector.broadcast %124 : f32 to vector<8x128xf32>
      %539 = arith.mulf %499, %538 : vector<8x128xf32>
      %540 = arith.addf %537, %539 : vector<8x128xf32>
      %541 = vector.broadcast %127 : f32 to vector<8x128xf32>
      %542 = arith.addf %540, %541 : vector<8x128xf32>
      %cst_35 = arith.constant 0.000000e+00 : f32
      %543 = vector.broadcast %cst_35 : f32 to vector<8x128xf32>
      %544 = arith.maximumf %542, %543 : vector<8x128xf32>
      %545 = vector.broadcast %128 : f32 to vector<8x128xf32>
      %546 = arith.mulf %514, %545 : vector<8x128xf32>
      %547 = vector.broadcast %129 : f32 to vector<8x128xf32>
      %548 = arith.mulf %529, %547 : vector<8x128xf32>
      %549 = arith.addf %546, %548 : vector<8x128xf32>
      %550 = vector.broadcast %130 : f32 to vector<8x128xf32>
      %551 = arith.mulf %544, %550 : vector<8x128xf32>
      %552 = arith.addf %549, %551 : vector<8x128xf32>
      %553 = vector.broadcast %131 : f32 to vector<8x128xf32>
      %554 = arith.addf %552, %553 : vector<8x128xf32>
      %555 = arith.index_cast %136 : i32 to index
      %c0_36 = arith.constant 0 : index
      %556 = vector.load %arg3[%555, %c0_36] : memref<16x128xf32, #tpu.memory_space<vmem>>, vector<8x128xf32>
      tpu.vector_store %arg3[%555, %c0_36], %554 {strides = array<i32>} : memref<16x128xf32, #tpu.memory_space<vmem>>, vector<8x128xf32>,
    }
    %c2_i32_0 = arith.constant 2 : i32
    return
  }
  func.func @transform_0(%arg0: i32) -> i32 {
    %c0_i32 = arith.constant 0 : i32
    %c0_i32_0 = arith.constant 0 : i32
    return %c0_i32 : i32
  }
  func.func @transform_1(%arg0: i32) -> (i32, i32, i32) {
    %c0_i32 = arith.constant 0 : i32
    %c0_i32_0 = arith.constant 0 : i32
    %c0_i32_1 = arith.constant 0 : i32
    return %c0_i32, %arg0, %c0_i32_0 : i32, i32, i32
  }
  func.func @transform_2(%arg0: i32) -> (i32, i32) {
    %c0_i32 = arith.constant 0 : i32
    %c0_i32_0 = arith.constant 0 : i32
    return %arg0, %c0_i32 : i32, i32
  }
}

</mosaic_0001>

<llo_original>
// kernel: tpu_custom_call.1
$region0: #{tpu_custom_call.1}
  #allocation0 [shape = 'u32[]', space=smem, size = 0x4, offset = 0x4, fixed_abs, tag = 'smem constant byte address 0x4 - core index']
  #allocation1 [shape = 'u32[144,128]{1,0:T(1,128)}', space=vmem, size = 0x12000, scoped, tag = 'internal scratch']
  #allocation8 [shape = 's32[]', space=sflag, size = 0x4, offset = 0, fixed_abs, tag = 'sflag constant byte address 0x0 - dummy sync flag']
  %s0 = inlined_call_operand.hbm [shape: f32[132], index: 0, kind: input, shape index: {}]
  %s1 = inlined_call_operand.hbm [shape: f32[8,32,128], index: 1, kind: input, shape index: {}]
  %s2 = inlined_call_operand.hbm [shape: f32[32,128], index: 2, kind: output, shape index: {}]
  %s3 = sld [smem:[#allocation0]]
  $region56: #{tpu_custom_call.1} parent=0
    _
  %s5 = ssub.s32 1, %s3
  %s6 = scalar_select 0, %s5, %s3
  $region1: #{tpu_custom_call.1} parent=0
    #allocation2 [shape = 'u8[1024]{0}', space=smem, size = 0x400, scoped, tag = 'input window, operand 0, single buffered']
    #allocation3 [shape = 's32[2]{0}', space=sflag, size = 0x8, scoped, tag = 'scoped memory for tpu_custom_call.1']
    #allocation4 [shape = 's32[2]{0}', space=sflag, size = 0x8, scoped, tag = 'scoped memory for tpu_custom_call.1']
    #allocation5 [shape = 's32[2]{0}', space=sflag, size = 0x8, scoped, tag = 'scoped memory for tpu_custom_call.1']
    #allocation6 [shape = 'u8[131072]{0}', space=vmem, size = 0x20000, scoped, tag = 'input window, operand 1']
    #allocation7 [shape = 'u8[16384]{0}', space=vmem, size = 0x4000, scoped, tag = 'output window, operand 0']
    %7 = vsyncpa [#allocation5], 0
    %8 = vsyncpa [#allocation3], 0
    %s9 = scalar_lea.sflag [#allocation3], 1
    %10 = vsyncpa %s9, 0
    %11 = vsyncpa [#allocation4], 0
    %s12 = scalar_lea.sflag [#allocation4], 1
    %13 = vsyncpa %s12, 0
    loop: start=0, step=1, limit=4
    $region2: #{tpu_custom_call.1} parent=1 // loop_pre_header
      _
    $region3: #{tpu_custom_call.1} parent=1 // loop_header
      %s15 = sphi 0, %s19
      %p16 = scmp.ge.s32.totalorder %s15, 4
      %s23 = sphi 0, %s23
      %s25 = sphi 0, %s23
      %s26 = sphi 0, %s25
      %s40 = sphi 0, %s26
      %s46 = sphi 0, %s48
      %s49 = sphi 0, %s46
      %s50 = sphi 0, %s49
      %s66 = sphi 0, %s50
      %s72 = sphi 0, %s74
      %s75 = sphi 0, %s72
      %s76 = sphi 0, %s75
      %s92 = sphi 0, %s76
    $region4: #{tpu_custom_call.1} parent=1 // loop_header_branch
      %18 = sbr.rel (%p16) target = $region8
    $region5: #{tpu_custom_call.1} parent=1 // loop_body
      %s20 = ssub.s32 %s15, 1
      %s21 = ssub.s32 %s15, 2
      %s22 = sadd.s32 %s15, 1
      %s24 = sadd.s32 %s23, 1
      %p27 = scmp.eq.s32.totalorder %s15, 1
      %p28 = scmp.ne.s32.totalorder %s23, %s25
      %p29 = scmp.eq.s32.totalorder %s15, 0
      %p30 = por %p28, %p29
      %p31 = scmp.ne.s32.totalorder %s23, %s25
      %p32 = scmp.eq.s32.totalorder %s20, 1
      %p33 = por %p31, %p32
      %p34 = scmp.ne.s32.totalorder %s25, %s26
      %p35 = scmp.eq.s32.totalorder %s20, 0
      %p36 = por %p34, %p35
      %p37 = scmp.ne.s32.totalorder %s25, %s26
      %p38 = scmp.eq.s32.totalorder %s21, 1
      %p39 = por %p37, %p38
      %p41 = scmp.ne.s32.totalorder %s26, %s40
      %p42 = scmp.eq.s32.totalorder %s21, 0
      %p43 = por %p41, %p42
      %s44 = ssub.s32 %s15, %s22
      %p45 = scmp.eq.s32.totalorder %s44, 0
      %s47 = sadd.s32 %s46, 1
      %s48 = scalar_select %p45, %s46, %s47
      %p51 = pneg %p45
      %p52 = scmp.eq.s32.totalorder %s15, 1
      %p53 = por %p51, %p52
      %p54 = scmp.ne.s32.totalorder %s46, %s49
      %p55 = scmp.eq.s32.totalorder %s15, 0
      %p56 = por %p54, %p55
      %p57 = scmp.ne.s32.totalorder %s46, %s49
      %p58 = scmp.eq.s32.totalorder %s20, 1
      %p59 = por %p57, %p58
      %p60 = scmp.ne.s32.totalorder %s49, %s50
      %p61 = scmp.eq.s32.totalorder %s20, 0
      %p62 = por %p60, %p61
      %p63 = scmp.ne.s32.totalorder %s49, %s50
      %p64 = scmp.eq.s32.totalorder %s21, 1
      %p65 = por %p63, %p64
      %p67 = scmp.ne.s32.totalorder %s50, %s66
      %p68 = scmp.eq.s32.totalorder %s21, 0
      %p69 = por %p67, %p68
      %s70 = ssub.s32 %s15, %s22
      %p71 = scmp.eq.s32.totalorder %s70, 0
      %s73 = sadd.s32 %s72, 1
      %s74 = scalar_select %p71, %s72, %s73
      %p77 = pneg %p71
      %p78 = scmp.eq.s32.totalorder %s15, 1
      %p79 = por %p77, %p78
      %p80 = scmp.ne.s32.totalorder %s72, %s75
      %p81 = scmp.eq.s32.totalorder %s15, 0
      %p82 = por %p80, %p81
      %p83 = scmp.ne.s32.totalorder %s72, %s75
      %p84 = scmp.eq.s32.totalorder %s20, 1
      %p85 = por %p83, %p84
      %p86 = scmp.ne.s32.totalorder %s75, %s76
      %p87 = scmp.eq.s32.totalorder %s20, 0
      %p88 = por %p86, %p87
      %p89 = scmp.ne.s32.totalorder %s75, %s76
      %p90 = scmp.eq.s32.totalorder %s21, 1
      %p91 = por %p89, %p90
      %p93 = scmp.ne.s32.totalorder %s76, %s92
      %p94 = scmp.eq.s32.totalorder %s21, 0
      %p95 = por %p93, %p94
      %p96 = scmp.le.s32.totalorder 1, %s15
      %p97 = scmp.lt.s32.totalorder %s15, 3
      %p98 = pnand %p96, %p97
      %p99 = pneg %p98
      // Predicated region
      $region9: #{tpu_custom_call.1} parent=5 // pred_check
        _
      $region10: #{tpu_custom_call.1} parent=5 // pred_check_branch
        %101 = sbr.rel (%p98) target = $region12
      $region11: #{tpu_custom_call.1} parent=5 // pred_region
        %s102 = ssub.s32 %s15, 1
        // Predicated region
        $region13: #{tpu_custom_call.1} parent=11 // pred_check
          %p103 = pneg %p36
        $region14: #{tpu_custom_call.1} parent=11 // pred_check_branch
          %105 = sbr.rel (%p103) target = $region16
        $region15: #{tpu_custom_call.1} parent=11 // pred_region
          %s107 = ssub.s32 32, 32
          %108 = vsyncadd [#allocation5], %s107
          %111 = dma.hbm_to_smem %s0, 32, [#allocation2], [#allocation5]
        $region16: #{tpu_custom_call.1} parent=11 // pred_fallthru
          _
      $region12: #{tpu_custom_call.1} parent=5 // pred_fallthru
        _
      %p112 = scmp.lt.s32.totalorder %s15, 2
      // Predicated region
      $region17: #{tpu_custom_call.1} parent=5 // pred_check
        %p113 = pneg %p112
      $region18: #{tpu_custom_call.1} parent=5 // pred_check_branch
        %115 = sbr.rel (%p113) target = $region20
      $region19: #{tpu_custom_call.1} parent=5 // pred_region
        // Predicated region
        $region21: #{tpu_custom_call.1} parent=19 // pred_check
          %p116 = pneg %p56
        $region22: #{tpu_custom_call.1} parent=19 // pred_check_branch
          %118 = sbr.rel (%p116) target = $region24
        $region23: #{tpu_custom_call.1} parent=19 // pred_region
          #allocation9 [shape = 'u32[6]{0}', space=smem, size = 0x18, scoped, tag = 'DMA stride descriptor']
          %s119 = sand.u32 %s46, 1
          %s120 = scalar_lea.sflag [#allocation3], %s119
          %s121 = sand.u32 %s46, 1
          %s122 = smul.addr %s121, 128
          %s123 = scalar_lea.vmem [#allocation6], %s122
          %s124 = smul.u32 2, %s15
          %s126 = ssub.s32 2048, 2048
          %127 = vsyncadd %s120, %s126
          %s128 = smul.addr %s124, 128
          %s129 = scalar_lea.hbm %s1, %s128
          %s131 = sshll.u32 1, 14
          %s132 = sxor.u32 4294967295, %s131
          %s134 = sld [smem:[#allocation0]]
          %s135 = sadd.s32 2, %s134
          %s137 = sshll.u32 7, 26
          %s138 = sxor.u32 4294967295, %s137
          %s139 = sand.u32 0, %s138
          %s140 = sshll.u32 %s135, 26
          %s141 = sor.u32 %s139, %s140
          %s142 = sshll.u32 %s123, 4
          %s143 = int_to_ptr.vmem [resolvable:$true] %s142
          %149 = sst [smem:[#allocation9]] 512
          %s150 = scalar_lea.smem [#allocation9], 1
          %151 = sst [smem:[%s150]] 256
          %s152 = scalar_lea.smem [#allocation9], 2
          %153 = sst [smem:[%s152]] 2
          %s154 = scalar_lea.smem [#allocation9], 3
          %155 = sst [smem:[%s154]] 128
          %s156 = scalar_lea.smem [#allocation9], 4
          %157 = sst [smem:[%s156]] 128
          %s158 = scalar_lea.smem [#allocation9], 5
          %159 = sst [smem:[%s158]] 8
          %161 = dma.general %s129, 2048, %s143, %s120, [#allocation8], [#allocation9], %s141, 0
        $region24: #{tpu_custom_call.1} parent=19 // pred_fallthru
          _
      $region20: #{tpu_custom_call.1} parent=5 // pred_fallthru
        _
      %p162 = scmp.le.s32.totalorder 1, %s15
      %p163 = scmp.lt.s32.totalorder %s15, 3
      %p164 = pnand %p162, %p163
      %p165 = pneg %p164
      // Predicated region
      $region25: #{tpu_custom_call.1} parent=5 // pred_check
        _
      $region26: #{tpu_custom_call.1} parent=5 // pred_check_branch
        %167 = sbr.rel (%p164) target = $region28
      $region27: #{tpu_custom_call.1} parent=5 // pred_region
        %s168 = ssub.s32 %s15, 1
        // Predicated region
        $region29: #{tpu_custom_call.1} parent=27 // pred_check
          %p169 = pneg %p36
        $region30: #{tpu_custom_call.1} parent=27 // pred_check_branch
          %171 = sbr.rel (%p169) target = $region32
        $region31: #{tpu_custom_call.1} parent=27 // pred_region
          %172 = dma.done [#allocation5], 32
        $region32: #{tpu_custom_call.1} parent=27 // pred_fallthru
          _
        %s173 = sand.u32 %s49, 1
        %s174 = scalar_lea.sflag [#allocation3], %s173
        %s175 = sand.u32 %s49, 1
        %s176 = smul.addr %s175, 128
        %s177 = scalar_lea.vmem [#allocation6], %s176
        // Predicated region
        $region33: #{tpu_custom_call.1} parent=27 // pred_check
          %p178 = pneg %p62
        $region34: #{tpu_custom_call.1} parent=27 // pred_check_branch
          %180 = sbr.rel (%p178) target = $region36
        $region35: #{tpu_custom_call.1} parent=27 // pred_region
          %181 = dma.done %s174, 2048
        $region36: #{tpu_custom_call.1} parent=27 // pred_fallthru
          _
        %182 = sfence
        %p183 = pneg %p36
        %p184 = pneg %p33
        %s185 = sand.u32 %s49, 1
        %s186 = scalar_lea.sflag [#allocation3], %s185
        %s187 = sand.u32 %s49, 1
        %s188 = smul.addr %s187, 128
        %s189 = scalar_lea.vmem [#allocation6], %s188
        %p190 = pneg %p62
        %p191 = pneg %p59
        %p192 = pneg %p88
        %p193 = pneg %p85
        %s194 = sand.u32 %s75, 1
        %s195 = scalar_lea.sflag [#allocation4], %s194
        %s196 = sand.u32 %s75, 1
        %s197 = smul.addr %s196, 16
        %s198 = scalar_lea.vmem [#allocation7], %s197
        %s199 = smul.u32 2, %s20
        %s200 = smul.u32 2, %s20
        %s201 = sld [smem:[#allocation2]]
        %s202 = sld [smem:[#allocation2 + $0x1]]
        %s203 = sld [smem:[#allocation2 + $0x2]]
        %s204 = sld [smem:[#allocation2 + $0x3]]
        %s205 = sld [smem:[#allocation2 + $0x4]]
        %s206 = sld [smem:[#allocation2 + $0x5]]
        %s207 = sld [smem:[#allocation2 + $0x6]]
        %s208 = sld [smem:[#allocation2 + $0x7]]
        %s209 = sld [smem:[#allocation2 + $0x8]]
        %s210 = sld [smem:[#allocation2 + $0x9]]
        %s211 = sld [smem:[#allocation2 + $0xa]]
        %s212 = sld [smem:[#allocation2 + $0xb]]
        %s213 = sld [smem:[#allocation2 + $0xc]]
        %s214 = sld [smem:[#allocation2 + $0xd]]
        %s215 = sld [smem:[#allocation2 + $0xe]]
        %s216 = sld [smem:[#allocation2 + $0xf]]
        %s217 = sld [smem:[#allocation2 + $0x10]]
        %s218 = sld [smem:[#allocation2 + $0x11]]
        %s219 = sld [smem:[#allocation2 + $0x12]]
        %s220 = sld [smem:[#allocation2 + $0x13]]
        %s221 = sld [smem:[#allocation2 + $0x14]]
        %s222 = sld [smem:[#allocation2 + $0x15]]
        %s223 = sld [smem:[#allocation2 + $0x16]]
        %s224 = sld [smem:[#allocation2 + $0x17]]
        %s225 = sld [smem:[#allocation2 + $0x18]]
        %s226 = sld [smem:[#allocation2 + $0x19]]
        %s227 = sld [smem:[#allocation2 + $0x1a]]
        %s228 = sld [smem:[#allocation2 + $0x1b]]
        %s229 = sld [smem:[#allocation2 + $0x1c]]
        %s230 = sld [smem:[#allocation2 + $0x1d]]
        %s231 = sld [smem:[#allocation2 + $0x1e]]
        %s232 = sld [smem:[#allocation2 + $0x1f]]
        %s233 = sld [smem:[#allocation2 + $0x20]]
        %s234 = sld [smem:[#allocation2 + $0x21]]
        %s235 = sld [smem:[#allocation2 + $0x22]]
        %s236 = sld [smem:[#allocation2 + $0x23]]
        %s237 = sld [smem:[#allocation2 + $0x24]]
        %s238 = sld [smem:[#allocation2 + $0x25]]
        %s239 = sld [smem:[#allocation2 + $0x26]]
        %s240 = sld [smem:[#allocation2 + $0x27]]
        %s241 = sld [smem:[#allocation2 + $0x28]]
        %s242 = sld [smem:[#allocation2 + $0x29]]
        %s243 = sld [smem:[#allocation2 + $0x2a]]
        %s244 = sld [smem:[#allocation2 + $0x2b]]
        %s245 = sld [smem:[#allocation2 + $0x2c]]
        %s246 = sld [smem:[#allocation2 + $0x2d]]
        %s247 = sld [smem:[#allocation2 + $0x2e]]
        %s248 = sld [smem:[#allocation2 + $0x2f]]
        %s249 = sld [smem:[#allocation2 + $0x30]]
        %s250 = sld [smem:[#allocation2 + $0x31]]
        %s251 = sld [smem:[#allocation2 + $0x32]]
        %s252 = sld [smem:[#allocation2 + $0x33]]
        %s253 = sld [smem:[#allocation2 + $0x34]]
        %s254 = sld [smem:[#allocation2 + $0x35]]
        %s255 = sld [smem:[#allocation2 + $0x36]]
        %s256 = sld [smem:[#allocation2 + $0x37]]
        %s257 = sld [smem:[#allocation2 + $0x38]]
        %s258 = sld [smem:[#allocation2 + $0x39]]
        %s259 = sld [smem:[#allocation2 + $0x3a]]
        %s260 = sld [smem:[#allocation2 + $0x3b]]
        %s261 = sld [smem:[#allocation2 + $0x3c]]
        %s262 = sld [smem:[#allocation2 + $0x3d]]
        %s263 = sld [smem:[#allocation2 + $0x3e]]
        %s264 = sld [smem:[#allocation2 + $0x3f]]
        %s265 = sld [smem:[#allocation2 + $0x40]]
        %s266 = sld [smem:[#allocation2 + $0x41]]
        %s267 = sld [smem:[#allocation2 + $0x42]]
        %s268 = sld [smem:[#allocation2 + $0x43]]
        %s269 = sld [smem:[#allocation2 + $0x44]]
        %s270 = sld [smem:[#allocation2 + $0x45]]
        %s271 = sld [smem:[#allocation2 + $0x46]]
        %s272 = sld [smem:[#allocation2 + $0x47]]
        %s273 = sld [smem:[#allocation2 + $0x48]]
        %s274 = sld [smem:[#allocation2 + $0x49]]
        %s275 = sld [smem:[#allocation2 + $0x4a]]
        %s276 = sld [smem:[#allocation2 + $0x4b]]
        %s277 = sld [smem:[#allocation2 + $0x4c]]
        %s278 = sld [smem:[#allocation2 + $0x4d]]
        %s279 = sld [smem:[#allocation2 + $0x4e]]
        %s280 = sld [smem:[#allocation2 + $0x4f]]
        %s281 = sld [smem:[#allocation2 + $0x50]]
        %s282 = sld [smem:[#allocation2 + $0x51]]
        %s283 = sld [smem:[#allocation2 + $0x52]]
        %s284 = sld [smem:[#allocation2 + $0x53]]
        %s285 = sld [smem:[#allocation2 + $0x54]]
        %s286 = sld [smem:[#allocation2 + $0x55]]
        %s287 = sld [smem:[#allocation2 + $0x56]]
        %s288 = sld [smem:[#allocation2 + $0x57]]
        %s289 = sld [smem:[#allocation2 + $0x58]]
        %s290 = sld [smem:[#allocation2 + $0x59]]
        %s291 = sld [smem:[#allocation2 + $0x5a]]
        %s292 = sld [smem:[#allocation2 + $0x5b]]
        %s293 = sld [smem:[#allocation2 + $0x5c]]
        %s294 = sld [smem:[#allocation2 + $0x5d]]
        %s295 = sld [smem:[#allocation2 + $0x5e]]
        %s296 = sld [smem:[#allocation2 + $0x5f]]
        %s297 = sld [smem:[#allocation2 + $0x60]]
        %s298 = sld [smem:[#allocation2 + $0x61]]
        %s299 = sld [smem:[#allocation2 + $0x62]]
        %s300 = sld [smem:[#allocation2 + $0x63]]
        %s301 = sld [smem:[#allocation2 + $0x64]]
        %s302 = sld [smem:[#allocation2 + $0x65]]
        %s303 = sld [smem:[#allocation2 + $0x66]]
        %s304 = sld [smem:[#allocation2 + $0x67]]
        %s305 = sld [smem:[#allocation2 + $0x68]]
        %s306 = sld [smem:[#allocation2 + $0x69]]
        %s307 = sld [smem:[#allocation2 + $0x6a]]
        %s308 = sld [smem:[#allocation2 + $0x6b]]
        %s309 = sld [smem:[#allocation2 + $0x6c]]
        %s310 = sld [smem:[#allocation2 + $0x6d]]
        %s311 = sld [smem:[#allocation2 + $0x6e]]
        %s312 = sld [smem:[#allocation2 + $0x6f]]
        %s313 = sld [smem:[#allocation2 + $0x70]]
        %s314 = sld [smem:[#allocation2 + $0x71]]
        %s315 = sld [smem:[#allocation2 + $0x72]]
        %s316 = sld [smem:[#allocation2 + $0x73]]
        %s317 = sld [smem:[#allocation2 + $0x74]]
        %s318 = sld [smem:[#allocation2 + $0x75]]
        %s319 = sld [smem:[#allocation2 + $0x76]]
        %s320 = sld [smem:[#allocation2 + $0x77]]
        %s321 = sld [smem:[#allocation2 + $0x78]]
        %s322 = sld [smem:[#allocation2 + $0x79]]
        %s323 = sld [smem:[#allocation2 + $0x7a]]
        %s324 = sld [smem:[#allocation2 + $0x7b]]
        %s325 = sld [smem:[#allocation2 + $0x7c]]
        %s326 = sld [smem:[#allocation2 + $0x7d]]
        %s327 = sld [smem:[#allocation2 + $0x7e]]
        %s328 = sld [smem:[#allocation2 + $0x7f]]
        %s329 = sld [smem:[#allocation2 + $0x80]]
        %s330 = sld [smem:[#allocation2 + $0x81]]
        %s331 = sld [smem:[#allocation2 + $0x82]]
        %s332 = sld [smem:[#allocation2 + $0x83]]
        loop: start=0, step=1, limit=2
        $region37: #{tpu_custom_call.1} parent=27 // loop_pre_header
          _
        $region38: #{tpu_custom_call.1} parent=27 // loop_header
          %s334 = sphi 0, %s338
          %p335 = scmp.ge.s32.totalorder %s334, 2
        $region39: #{tpu_custom_call.1} parent=27 // loop_header_branch
          %337 = sbr.rel (%p335) target = $region43
        $region40: #{tpu_custom_call.1} parent=27 // loop_body
          %s339 = smul.u32 %s334, 8
          %s340 = scalar_lea.vmem %s177, %s339 [#allocation6]
          %v341 = vld [vmem:[%s340] sm:$0xff]
          %s342 = sadd.s32 %s339, 16
          %s343 = scalar_lea.vmem %s177, %s342 [#allocation6]
          %v344 = vld [vmem:[%s343] sm:$0xff]
          %s345 = sadd.s32 %s339, 32
          %s346 = scalar_lea.vmem %s177, %s345 [#allocation6]
          %v347 = vld [vmem:[%s346] sm:$0xff]
          %s348 = sadd.s32 %s339, 48
          %s349 = scalar_lea.vmem %s177, %s348 [#allocation6]
          %v350 = vld [vmem:[%s349] sm:$0xff]
          %s351 = sadd.s32 %s339, 64
          %s352 = scalar_lea.vmem %s177, %s351 [#allocation6]
          %v353 = vld [vmem:[%s352] sm:$0xff]
          %s354 = sadd.s32 %s339, 80
          %s355 = scalar_lea.vmem %s177, %s354 [#allocation6]
          %v356 = vld [vmem:[%s355] sm:$0xff]
          %s357 = sadd.s32 %s339, 96
          %s358 = scalar_lea.vmem %s177, %s357 [#allocation6]
          %v359 = vld [vmem:[%s358] sm:$0xff]
          %s360 = sadd.s32 %s339, 112
          %s361 = scalar_lea.vmem %s177, %s360 [#allocation6]
          %v362 = vld [vmem:[%s361] sm:$0xff]
          %v363 = vstv %s201
          %v364 = vmul.f32 %v341, %v363
          %v365 = vstv %s207
          %v366 = vmul.f32 %v344, %v365
          %v367 = vadd.f32 %v364, %v366
          %v368 = vstv %s213
          %v369 = vmul.f32 %v347, %v368
          %v370 = vadd.f32 %v367, %v369
          %v371 = vstv %s219
          %v372 = vmul.f32 %v350, %v371
          %v373 = vadd.f32 %v370, %v372
          %v374 = vstv %s225
          %v375 = vmul.f32 %v353, %v374
          %v376 = vadd.f32 %v373, %v375
          %v377 = vstv %s231
          %v378 = vmul.f32 %v356, %v377
          %v379 = vadd.f32 %v376, %v378
          %v380 = vstv %s237
          %v381 = vmul.f32 %v359, %v380
          %v382 = vadd.f32 %v379, %v381
          %v383 = vstv %s243
          %v384 = vmul.f32 %v362, %v383
          %v385 = vadd.f32 %v382, %v384
          %v386 = vstv %s249
          %v387 = vadd.f32 %v385, %v386
          %v388 = vmax.f32 %v387, 0.0
          %v389 = vstv %s202
          %v390 = vmul.f32 %v341, %v389
          %v391 = vstv %s208
          %v392 = vmul.f32 %v344, %v391
          %v393 = vadd.f32 %v390, %v392
          %v394 = vstv %s214
          %v395 = vmul.f32 %v347, %v394
          %v396 = vadd.f32 %v393, %v395
          %v397 = vstv %s220
          %v398 = vmul.f32 %v350, %v397
          %v399 = vadd.f32 %v396, %v398
          %v400 = vstv %s226
          %v401 = vmul.f32 %v353, %v400
          %v402 = vadd.f32 %v399, %v401
          %v403 = vstv %s232
          %v404 = vmul.f32 %v356, %v403
          %v405 = vadd.f32 %v402, %v404
          %v406 = vstv %s238
          %v407 = vmul.f32 %v359, %v406
          %v408 = vadd.f32 %v405, %v407
          %v409 = vstv %s244
          %v410 = vmul.f32 %v362, %v409
          %v411 = vadd.f32 %v408, %v410
          %v412 = vstv %s250
          %v413 = vadd.f32 %v411, %v412
          %v414 = vmax.f32 %v413, 0.0
          %v415 = vstv %s203
          %v416 = vmul.f32 %v341, %v415
          %v417 = vstv %s209
          %v418 = vmul.f32 %v344, %v417
          %v419 = vadd.f32 %v416, %v418
          %v420 = vstv %s215
          %v421 = vmul.f32 %v347, %v420
          %v422 = vadd.f32 %v419, %v421
          %v423 = vstv %s221
          %v424 = vmul.f32 %v350, %v423
          %v425 = vadd.f32 %v422, %v424
          %v426 = vstv %s227
          %v427 = vmul.f32 %v353, %v426
          %v428 = vadd.f32 %v425, %v427
          %v429 = vstv %s233
          %v430 = vmul.f32 %v356, %v429
          %v431 = vadd.f32 %v428, %v430
          %v432 = vstv %s239
          %v433 = vmul.f32 %v359, %v432
          %v434 = vadd.f32 %v431, %v433
          %v435 = vstv %s245
          %v436 = vmul.f32 %v362, %v435
          %v437 = vadd.f32 %v434, %v436
          %v438 = vstv %s251
          %v439 = vadd.f32 %v437, %v438
          %v440 = vmax.f32 %v439, 0.0
          %v441 = vstv %s204
          %v442 = vmul.f32 %v341, %v441
          %v443 = vstv %s210
          %v444 = vmul.f32 %v344, %v443
          %v445 = vadd.f32 %v442, %v444
          %v446 = vstv %s216
          %v447 = vmul.f32 %v347, %v446
          %v448 = vadd.f32 %v445, %v447
          %v449 = vstv %s222
          %v450 = vmul.f32 %v350, %v449
          %v451 = vadd.f32 %v448, %v450
          %v452 = vstv %s228
          %v453 = vmul.f32 %v353, %v452
          %v454 = vadd.f32 %v451, %v453
          %v455 = vstv %s234
          %v456 = vmul.f32 %v356, %v455
          %v457 = vadd.f32 %v454, %v456
          %v458 = vstv %s240
          %v459 = vmul.f32 %v359, %v458
          %v460 = vadd.f32 %v457, %v459
          %v461 = vstv %s246
          %v462 = vmul.f32 %v362, %v461
          %v463 = vadd.f32 %v460, %v462
          %v464 = vstv %s252
          %v465 = vadd.f32 %v463, %v464
          %v466 = vmax.f32 %v465, 0.0
          %v467 = vstv %s205
          %v468 = vmul.f32 %v341, %v467
          %v469 = vstv %s211
          %v470 = vmul.f32 %v344, %v469
          %v471 = vadd.f32 %v468, %v470
          %v472 = vstv %s217
          %v473 = vmul.f32 %v347, %v472
          %v474 = vadd.f32 %v471, %v473
          %v475 = vstv %s223
          %v476 = vmul.f32 %v350, %v475
          %v477 = vadd.f32 %v474, %v476
          %v478 = vstv %s229
          %v479 = vmul.f32 %v353, %v478
          %v480 = vadd.f32 %v477, %v479
          %v481 = vstv %s235
          %v482 = vmul.f32 %v356, %v481
          %v483 = vadd.f32 %v480, %v482
          %v484 = vstv %s241
          %v485 = vmul.f32 %v359, %v484
          %v486 = vadd.f32 %v483, %v485
          %v487 = vstv %s247
          %v488 = vmul.f32 %v362, %v487
          %v489 = vadd.f32 %v486, %v488
          %v490 = vstv %s253
          %v491 = vadd.f32 %v489, %v490
          %v492 = vmax.f32 %v491, 0.0
          %v493 = vstv %s206
          %v494 = vmul.f32 %v341, %v493
          %v495 = vstv %s212
          %v496 = vmul.f32 %v344, %v495
          %v497 = vadd.f32 %v494, %v496
          %v498 = vstv %s218
          %v499 = vmul.f32 %v347, %v498
          %v500 = vadd.f32 %v497, %v499
          %v501 = vstv %s224
          %v502 = vmul.f32 %v350, %v501
          %v503 = vadd.f32 %v500, %v502
          %v504 = vstv %s230
          %v505 = vmul.f32 %v353, %v504
          %v506 = vadd.f32 %v503, %v505
          %v507 = vstv %s236
          %v508 = vmul.f32 %v356, %v507
          %v509 = vadd.f32 %v506, %v508
          %v510 = vstv %s242
          %v511 = vmul.f32 %v359, %v510
          %v512 = vadd.f32 %v509, %v511
          %v513 = vstv %s248
          %v514 = vmul.f32 %v362, %v513
          %v515 = vadd.f32 %v512, %v514
          %v516 = vstv %s254
          %v517 = vadd.f32 %v515, %v516
          %v518 = vmax.f32 %v517, 0.0
          %v519 = vstv %s255
          %v520 = vmul.f32 %v388, %v519
          %v521 = vstv %s260
          %v522 = vmul.f32 %v414, %v521
          %v523 = vadd.f32 %v520, %v522
          %v524 = vstv %s265
          %v525 = vmul.f32 %v440, %v524
          %v526 = vadd.f32 %v523, %v525
          %v527 = vstv %s270
          %v528 = vmul.f32 %v466, %v527
          %v529 = vadd.f32 %v526, %v528
          %v530 = vstv %s275
          %v531 = vmul.f32 %v492, %v530
          %v532 = vadd.f32 %v529, %v531
          %v533 = vstv %s280
          %v534 = vmul.f32 %v518, %v533
          %v535 = vadd.f32 %v532, %v534
          %v536 = vstv %s285
          %v537 = vadd.f32 %v535, %v536
          %v538 = vmax.f32 %v537, 0.0
          %v539 = vstv %s256
          %v540 = vmul.f32 %v388, %v539
          %v541 = vstv %s261
          %v542 = vmul.f32 %v414, %v541
          %v543 = vadd.f32 %v540, %v542
          %v544 = vstv %s266
          %v545 = vmul.f32 %v440, %v544
          %v546 = vadd.f32 %v543, %v545
          %v547 = vstv %s271
          %v548 = vmul.f32 %v466, %v547
          %v549 = vadd.f32 %v546, %v548
          %v550 = vstv %s276
          %v551 = vmul.f32 %v492, %v550
          %v552 = vadd.f32 %v549, %v551
          %v553 = vstv %s281
          %v554 = vmul.f32 %v518, %v553
          %v555 = vadd.f32 %v552, %v554
          %v556 = vstv %s286
          %v557 = vadd.f32 %v555, %v556
          %v558 = vmax.f32 %v557, 0.0
          %v559 = vstv %s257
          %v560 = vmul.f32 %v388, %v559
          %v561 = vstv %s262
          %v562 = vmul.f32 %v414, %v561
          %v563 = vadd.f32 %v560, %v562
          %v564 = vstv %s267
          %v565 = vmul.f32 %v440, %v564
          %v566 = vadd.f32 %v563, %v565
          %v567 = vstv %s272
          %v568 = vmul.f32 %v466, %v567
          %v569 = vadd.f32 %v566, %v568
          %v570 = vstv %s277
          %v571 = vmul.f32 %v492, %v570
          %v572 = vadd.f32 %v569, %v571
          %v573 = vstv %s282
          %v574 = vmul.f32 %v518, %v573
          %v575 = vadd.f32 %v572, %v574
          %v576 = vstv %s287
          %v577 = vadd.f32 %v575, %v576
          %v578 = vmax.f32 %v577, 0.0
          %v579 = vstv %s258
          %v580 = vmul.f32 %v388, %v579
          %v581 = vstv %s263
          %v582 = vmul.f32 %v414, %v581
          %v583 = vadd.f32 %v580, %v582
          %v584 = vstv %s268
          %v585 = vmul.f32 %v440, %v584
          %v586 = vadd.f32 %v583, %v585
          %v587 = vstv %s273
          %v588 = vmul.f32 %v466, %v587
          %v589 = vadd.f32 %v586, %v588
          %v590 = vstv %s278
          %v591 = vmul.f32 %v492, %v590
          %v592 = vadd.f32 %v589, %v591
          %v593 = vstv %s283
          %v594 = vmul.f32 %v518, %v593
          %v595 = vadd.f32 %v592, %v594
          %v596 = vstv %s288
          %v597 = vadd.f32 %v595, %v596
          %v598 = vmax.f32 %v597, 0.0
          %v599 = vstv %s259
          %v600 = vmul.f32 %v388, %v599
          %v601 = vstv %s264
          %v602 = vmul.f32 %v414, %v601
          %v603 = vadd.f32 %v600, %v602
          %v604 = vstv %s269
          %v605 = vmul.f32 %v440, %v604
          %v606 = vadd.f32 %v603, %v605
          %v607 = vstv %s274
          %v608 = vmul.f32 %v466, %v607
          %v609 = vadd.f32 %v606, %v608
          %v610 = vstv %s279
          %v611 = vmul.f32 %v492, %v610
          %v612 = vadd.f32 %v609, %v611
          %v613 = vstv %s284
          %v614 = vmul.f32 %v518, %v613
          %v615 = vadd.f32 %v612, %v614
          %v616 = vstv %s289
          %v617 = vadd.f32 %v615, %v616
          %v618 = vmax.f32 %v617, 0.0
          %v619 = vstv %s290
          %v620 = vmul.f32 %v538, %v619
          %v621 = vstv %s294
          %v622 = vmul.f32 %v558, %v621
          %v623 = vadd.f32 %v620, %v622
          %v624 = vstv %s298
          %v625 = vmul.f32 %v578, %v624
          %v626 = vadd.f32 %v623, %v625
          %v627 = vstv %s302
          %v628 = vmul.f32 %v598, %v627
          %v629 = vadd.f32 %v626, %v628
          %v630 = vstv %s306
          %v631 = vmul.f32 %v618, %v630
          %v632 = vadd.f32 %v629, %v631
          %v633 = vstv %s310
          %v634 = vadd.f32 %v632, %v633
          %v635 = vmax.f32 %v634, 0.0
          %v636 = vstv %s291
          %v637 = vmul.f32 %v538, %v636
          %v638 = vstv %s295
          %v639 = vmul.f32 %v558, %v638
          %v640 = vadd.f32 %v637, %v639
          %v641 = vstv %s299
          %v642 = vmul.f32 %v578, %v641
          %v643 = vadd.f32 %v640, %v642
          %v644 = vstv %s303
          %v645 = vmul.f32 %v598, %v644
          %v646 = vadd.f32 %v643, %v645
          %v647 = vstv %s307
          %v648 = vmul.f32 %v618, %v647
          %v649 = vadd.f32 %v646, %v648
          %v650 = vstv %s311
          %v651 = vadd.f32 %v649, %v650
          %v652 = vmax.f32 %v651, 0.0
          %v653 = vstv %s292
          %v654 = vmul.f32 %v538, %v653
          %v655 = vstv %s296
          %v656 = vmul.f32 %v558, %v655
          %v657 = vadd.f32 %v654, %v656
          %v658 = vstv %s300
          %v659 = vmul.f32 %v578, %v658
          %v660 = vadd.f32 %v657, %v659
          %v661 = vstv %s304
          %v662 = vmul.f32 %v598, %v661
          %v663 = vadd.f32 %v660, %v662
          %v664 = vstv %s308
          %v665 = vmul.f32 %v618, %v664
          %v666 = vadd.f32 %v663, %v665
          %v667 = vstv %s312
          %v668 = vadd.f32 %v666, %v667
          %v669 = vmax.f32 %v668, 0.0
          %v670 = vstv %s293
          %v671 = vmul.f32 %v538, %v670
          %v672 = vstv %s297
          %v673 = vmul.f32 %v558, %v672
          %v674 = vadd.f32 %v671, %v673
          %v675 = vstv %s301
          %v676 = vmul.f32 %v578, %v675
          %v677 = vadd.f32 %v674, %v676
          %v678 = vstv %s305
          %v679 = vmul.f32 %v598, %v678
          %v680 = vadd.f32 %v677, %v679
          %v681 = vstv %s309
          %v682 = vmul.f32 %v618, %v681
          %v683 = vadd.f32 %v680, %v682
          %v684 = vstv %s313
          %v685 = vadd.f32 %v683, %v684
          %v686 = vmax.f32 %v685, 0.0
          %v687 = vstv %s314
          %v688 = vmul.f32 %v635, %v687
          %v689 = vstv %s317
          %v690 = vmul.f32 %v652, %v689
          %v691 = vadd.f32 %v688, %v690
          %v692 = vstv %s320
          %v693 = vmul.f32 %v669, %v692
          %v694 = vadd.f32 %v691, %v693
          %v695 = vstv %s323
          %v696 = vmul.f32 %v686, %v695
          %v697 = vadd.f32 %v694, %v696
          %v698 = vstv %s326
          %v699 = vadd.f32 %v697, %v698
          %v700 = vmax.f32 %v699, 0.0
          %v701 = vstv %s315
          %v702 = vmul.f32 %v635, %v701
          %v703 = vstv %s318
          %v704 = vmul.f32 %v652, %v703
          %v705 = vadd.f32 %v702, %v704
          %v706 = vstv %s321
          %v707 = vmul.f32 %v669, %v706
          %v708 = vadd.f32 %v705, %v707
          %v709 = vstv %s324
          %v710 = vmul.f32 %v686, %v709
          %v711 = vadd.f32 %v708, %v710
          %v712 = vstv %s327
          %v713 = vadd.f32 %v711, %v712
          %v714 = vmax.f32 %v713, 0.0
          %v715 = vstv %s316
          %v716 = vmul.f32 %v635, %v715
          %v717 = vstv %s319
          %v718 = vmul.f32 %v652, %v717
          %v719 = vadd.f32 %v716, %v718
          %v720 = vstv %s322
          %v721 = vmul.f32 %v669, %v720
          %v722 = vadd.f32 %v719, %v721
          %v723 = vstv %s325
          %v724 = vmul.f32 %v686, %v723
          %v725 = vadd.f32 %v722, %v724
          %v726 = vstv %s328
          %v727 = vadd.f32 %v725, %v726
          %v728 = vmax.f32 %v727, 0.0
          %v729 = vstv %s329
          %v730 = vmul.f32 %v700, %v729
          %v731 = vstv %s330
          %v732 = vmul.f32 %v714, %v731
          %v733 = vadd.f32 %v730, %v732
          %v734 = vstv %s331
          %v735 = vmul.f32 %v728, %v734
          %v736 = vadd.f32 %v733, %v735
          %v737 = vstv %s332
          %v738 = vadd.f32 %v736, %v737
          %s739 = scalar_lea.vmem %s198, %s339 [#allocation7]
          %740 = vst [vmem:[%s739] sm:$0xff] %v738
        $region41: #{tpu_custom_call.1} parent=27 // loop_footer
          %s338 = sadd.s32 1, %s334
        $region42: #{tpu_custom_call.1} parent=27 // loop_footer_branch
          %333 = sbr.rel target = $region38
        $region43: #{tpu_custom_call.1} parent=27 // loop_exit
          _
        %s741 = sand.u32 %s75, 1
        %s742 = scalar_lea.sflag [#allocation4], %s741
        %s743 = sand.u32 %s75, 1
        %s744 = smul.addr %s743, 16
        %s745 = scalar_lea.vmem [#allocation7], %s744
        // Predicated region
        $region44: #{tpu_custom_call.1} parent=27 // pred_check
          %p746 = pneg %p85
        $region45: #{tpu_custom_call.1} parent=27 // pred_check_branch
          %748 = sbr.rel (%p746) target = $region47
        $region46: #{tpu_custom_call.1} parent=27 // pred_region
          %s749 = smul.u32 2, %s20
          %s751 = ssub.s32 256, 256
          %752 = vsyncadd %s742, %s751
          %s753 = smul.addr %s749, 128
          %s754 = scalar_lea.hbm %s2, %s753
          %s755 = sshll.u32 %s745, 4
          %s756 = int_to_ptr.vmem [resolvable:$true] %s755
          %761 = dma.vmem_to_hbm [thread:$0]  %s756, 256, %s754, %s742, 128, 128, 8
        $region47: #{tpu_custom_call.1} parent=27 // pred_fallthru
          _
      $region28: #{tpu_custom_call.1} parent=5 // pred_fallthru
        _
      %p762 = scmp.le.s32.totalorder 2, %s15
      // Predicated region
      $region48: #{tpu_custom_call.1} parent=5 // pred_check
        %p763 = pneg %p762
      $region49: #{tpu_custom_call.1} parent=5 // pred_check_branch
        %765 = sbr.rel (%p763) target = $region51
      $region50: #{tpu_custom_call.1} parent=5 // pred_region
        %s766 = ssub.s32 %s15, 2
        // Predicated region
        $region52: #{tpu_custom_call.1} parent=50 // pred_check
          %p767 = pneg %p91
        $region53: #{tpu_custom_call.1} parent=50 // pred_check_branch
          %769 = sbr.rel (%p767) target = $region55
        $region54: #{tpu_custom_call.1} parent=50 // pred_region
          %s770 = sand.u32 %s76, 1
          %s771 = scalar_lea.sflag [#allocation4], %s770
          %s772 = sand.u32 %s76, 1
          %s773 = smul.addr %s772, 16
          %s774 = scalar_lea.vmem [#allocation7], %s773
          %775 = dma.done %s771, 256
        $region55: #{tpu_custom_call.1} parent=50 // pred_fallthru
          _
      $region51: #{tpu_custom_call.1} parent=5 // pred_fallthru
        _
    $region6: #{tpu_custom_call.1} parent=1 // loop_footer
      %s19 = sadd.s32 1, %s15
    $region7: #{tpu_custom_call.1} parent=1 // loop_footer_branch
      %14 = sbr.rel target = $region3
    $region8: #{tpu_custom_call.1} parent=1 // loop_exit
      _
    %776 = vsyncpa [#allocation3], 1
    %s777 = scalar_lea.sflag [#allocation3], 1
    %778 = vsyncpa %s777, 1
    %779 = vsyncpa [#allocation4], 1
    %s780 = scalar_lea.sflag [#allocation4], 1
    %781 = vsyncpa %s780, 1
    %782 = vsyncpa [#allocation5], 1
    %s783 = scalar_lea.sflag [#allocation5], 1
    %784 = vsyncpa %s783, 1

</llo_original>
